<compile_context>
chip_gen: v5e
topology: v5e:2x2
jax: 0.10.0
libtpu: 0.0.40
codegen_flags: <defaults>
</compile_context>

<pallas_src>
import jax
import jax.numpy as jnp
from jax import lax
from jax.experimental import pallas as pl
from jax.experimental.pallas import tpu as pltpu


def _gcn2_fused_kernel(bw_ref, idx_ref, adj_ref, embed_ref, w_ref, g_ref, b_ref,
                       o_ref, e_scr):
    """Fully fused GCN_2 forward.

    bw_ref    : SMEM (L*T,)        Gconv BatchWeight, flattened [layer*T + t]
    idx_ref   : VMEM (B*N, 1) i32  node indices (stacked over batch)
    adj_ref   : VMEM (B, T, N, N)  raw adjacency per bond type
    embed_ref : VMEM (Kp, M)       atom embedding table (zero-padded rows)
    w_ref     : VMEM (L, T, M, M)  Gconv weights
    g_ref     : VMEM (L, N, 1)     BatchNorm gamma
    b_ref     : VMEM (L, N, 1)     BatchNorm beta
    o_ref     : VMEM (B*N, M)      output (reused as the resident H buffer)
    e_scr     : VMEM (T*B*N, B*N)  scratch: packed, normalized block adjacency
    """
    B, T, N, _ = adj_ref.shape
    BN, M = o_ref.shape
    L = w_ref.shape[0]
    K = embed_ref.shape[0]
    f32 = jnp.float32
    eps = 1e-5
    inv_cnt = 1.0 / (B * M)

    # ---- 1. embedding gather as a one-hot matmul: H0 = onehot(idx) @ embed ----
    onehot = (idx_ref[...] ==
              lax.broadcasted_iota(jnp.int32, (BN, K), 1)).astype(f32)   # (BN, K)
    h = jnp.dot(onehot, embed_ref[...], preferred_element_type=f32)      # (BN, M)

    # ---- 2. adjacency normalization + block packing (layer-invariant) --------
    # E_hat = adj + I ; d = rowsum(E_hat)^-1/2 ; E_norm = diag(d) E_hat diag(d).
    # Row block (t, b) of E_big holds E_norm[b, t] at lane columns
    # [b*N, (b+1)*N) and zeros elsewhere (block-diagonal over b).  The d_j
    # column scaling and the lane placement are fused into one selection matmul
    # per (b, t): (d_i * E_hat) @ (d_j * Sel_b), with Sel_b[j, c] = (c == j + b*N).
    eye_n = (lax.broadcasted_iota(jnp.int32, (N, N), 0) ==
             lax.broadcasted_iota(jnp.int32, (N, N), 1)).astype(f32)
    row_iota = lax.broadcasted_iota(jnp.int32, (N, BN), 0)
    col_iota = lax.broadcasted_iota(jnp.int32, (N, BN), 1)
    for b in range(B):                                     # static unroll
        sel_b = (col_iota == row_iota + b * N).astype(f32)          # (N, BN)
        for t in range(T):                                 # static unroll
            e_hat = adj_ref[b, t] + eye_n                            # (N, N)
            d = lax.rsqrt(jnp.sum(e_hat, axis=1, keepdims=True))     # (N, 1)
            placed = jnp.dot(d * e_hat, d * sel_b,
                             preferred_element_type=f32)             # (N, BN)
            r0 = (t * B + b) * N
            e_scr[r0:r0 + N, :] = placed
    e_big = e_scr[...]                                               # (T*BN, BN)

    # ---- 3. three fused (Gconv + BatchNorm1d) layers; H never leaves VMEM ----
    for layer in range(L):                                 # static unroll
        eh = jnp.dot(e_big, h, preferred_element_type=f32)           # (T*BN, M), 1 MXU op
        acc = jnp.zeros((BN, M), f32)
        for t in range(T):
            x = jnp.dot(eh[t * BN:(t + 1) * BN, :], w_ref[layer, t],
                        preferred_element_type=f32)                  # (BN, M)
            acc = acc + bw_ref[layer * T + t] * jnp.tanh(x)          # SMEM scalar

        # BatchNorm1d(N): training-mode stats per node over (batch, embed),
        # biased variance, eps=1e-5, affine gamma/beta.
        s = jnp.zeros((N, 1), f32)
        for b in range(B):
            s = s + jnp.sum(acc[b * N:(b + 1) * N, :], axis=1, keepdims=True)
        mean = s * inv_cnt                                           # (N, 1)

        xc = [acc[b * N:(b + 1) * N, :] - mean for b in range(B)]    # B x (N, M)
        v = jnp.zeros((N, 1), f32)
        for b in range(B):
            v = v + jnp.sum(xc[b] * xc[b], axis=1, keepdims=True)
        var = v * inv_cnt                                            # (N, 1) biased

        scale = lax.rsqrt(var + eps) * g_ref[layer]                  # (N, 1)
        shift = b_ref[layer]                                         # (N, 1)
        for b in range(B):
            o_ref[b * N:(b + 1) * N, :] = xc[b] * scale + shift
        h = o_ref[...]        # BN'd activation stays resident for the next layer


def prepare_params(embed, W_list, bw_list, gamma_list, beta_list):
    """One-time packing of module parameters (hoisted out of the forward path)."""
    L = len(W_list)
    N = gamma_list[0].shape[0]
    K, M = embed.shape
    K_pad = ((K + 7) // 8) * 8                       # pad gather table to sublane tile
    embed_p = jnp.zeros((K_pad, M), jnp.float32).at[:K, :].set(embed.astype(jnp.float32))
    return {
        "embed": embed_p,                                               # (Kp, M)
        "W": jnp.stack(W_list, axis=0).astype(jnp.float32),             # (L, T, M, M)
        "bw": jnp.concatenate([w.reshape(-1) for w in bw_list]).astype(jnp.float32),  # (L*T,)
        "gamma": jnp.stack(gamma_list, 0).reshape(L, N, 1).astype(jnp.float32),
        "beta": jnp.stack(beta_list, 0).reshape(L, N, 1).astype(jnp.float32),
    }


def gcn2_forward(node_idx, adj, packed):
    """GCN_2.forward: a single fused pallas_call; only reshapes happen outside."""
    B, T, N, _ = adj.shape
    M = packed["embed"].shape[1]
    idx = node_idx.reshape(B * N, 1).astype(jnp.int32)

    out = pl.pallas_call(
        _gcn2_fused_kernel,
        out_shape=jax.ShapeDtypeStruct((B * N, M), jnp.float32),
        in_specs=[
            pl.BlockSpec(memory_space=pltpu.MemorySpace.SMEM),   # bw     (L*T,) scalars
            pl.BlockSpec(memory_space=pltpu.MemorySpace.VMEM),   # idx    (B*N, 1)
            pl.BlockSpec(memory_space=pltpu.MemorySpace.VMEM),   # adj    (B, T, N, N)
            pl.BlockSpec(memory_space=pltpu.MemorySpace.VMEM),   # embed  (Kp, M)
            pl.BlockSpec(memory_space=pltpu.MemorySpace.VMEM),   # W      (L, T, M, M)
            pl.BlockSpec(memory_space=pltpu.MemorySpace.VMEM),   # gamma  (L, N, 1)
            pl.BlockSpec(memory_space=pltpu.MemorySpace.VMEM),   # beta   (L, N, 1)
        ],
        out_specs=pl.BlockSpec(memory_space=pltpu.MemorySpace.VMEM),
        scratch_shapes=[pltpu.VMEM((T * B * N, B * N), jnp.float32)],
    )(packed["bw"], idx, adj.astype(jnp.float32), packed["embed"],
      packed["W"], packed["gamma"], packed["beta"])
    return out.reshape(B, N, M)


# ------------------------------ pure-JAX reference ------------------------------
def _reference(node_idx, adj, params):
    H = jnp.take(params["embed"], node_idx, axis=0)
    n = adj.shape[2]
    E = adj + jnp.eye(n, dtype=adj.dtype)
    d = jnp.sum(E, axis=3) ** (-0.5)
    D = d[..., :, None] * jnp.eye(n, dtype=adj.dtype)        # diag_embed(d)
    for l in range(3):
        X = jnp.einsum('btij,btjk,btkl,blm,tmd->btid', D, E, D, H, params["W"][l])
        H = jnp.einsum('t,btid->bid', params["bw"][l], jnp.tanh(X))
        mean = jnp.mean(H, axis=(0, 2), keepdims=True)
        var = jnp.mean((H - mean) ** 2, axis=(0, 2), keepdims=True)
        Hn = (H - mean) * jax.lax.rsqrt(var + 1e-5)
        H = Hn * params["gamma"][l][None, :, None] + params["beta"][l][None, :, None]
    return H


if __name__ == "__main__":
    key = jax.random.PRNGKey(0)
    keys = jax.random.split(key, 10)

    # config: possible_atoms=3, possible_bonds=3, max_atom_num=13,
    #         node_feature_dim=32  =>  maxdim = 13 + 3 = 16
    B = 2                 # batch
    T = 3                 # bond types
    NUM_ATOMS = 3         # len(possible_atoms)
    MAXDIM = 13 + NUM_ATOMS
    M = 32                # embed dim

    # ---- deterministic parameter init (shapes from the module __init__) ----
    embed = jax.random.normal(keys[0], (NUM_ATOMS + 1, M), jnp.float32)
    embed = embed.at[0].set(0.0)                      # padding_idx = 0

    xavier_std = (2.0 / (M + M)) ** 0.5               # xavier_normal_ for (T, M, M)
    W = [xavier_std * jax.random.normal(keys[1 + i], (T, M, M), jnp.float32)
         for i in range(3)]
    bw = [jax.random.uniform(keys[4 + i], (T,), jnp.float32)      # torch.rand
          for i in range(3)]
    gamma = [jnp.ones((MAXDIM,), jnp.float32) for _ in range(3)]  # BN defaults
    beta = [jnp.zeros((MAXDIM,), jnp.float32) for _ in range(3)]

    params = {"embed": embed, "W": W, "bw": bw, "gamma": gamma, "beta": beta}

    # ---- inputs: N node-index array, E adjacency per bond type ----
    node_idx = jax.random.randint(keys[7], (B, MAXDIM), 0, NUM_ATOMS + 1)
    adj = jax.random.bernoulli(keys[8], 0.3, (B, T, MAXDIM, MAXDIM)).astype(
        jnp.float32)

    # Parameter packing done ONCE at init (hoisted out of the per-call path).
    packed = prepare_params(embed, W, bw, gamma, beta)
    fwd = jax.jit(gcn2_forward)

    out = fwd(node_idx, adj, packed)
    out = jax.block_until_ready(out)
    assert out.shape == (B, MAXDIM, M)

    ref = _reference(node_idx, adj, params)
    err = float(jnp.max(jnp.abs(out - ref)))
    assert err < 5e-3, f"max abs error vs reference: {err}"
    print("KERNEL_OK")
</pallas_src>

<mosaic_0001>
module attributes {stable_mosaic.version = 11 : i64} {
  func.func @_gcn2_fused_kernel(%arg0: memref<9xf32, #tpu.memory_space<smem>>, %arg1: memref<32x1xi32, #tpu.memory_space<vmem>>, %arg2: memref<2x3x16x16xf32, #tpu.memory_space<vmem>>, %arg3: memref<8x32xf32, #tpu.memory_space<vmem>>, %arg4: memref<3x3x32x32xf32, #tpu.memory_space<vmem>>, %arg5: memref<3x16x1xf32, #tpu.memory_space<vmem>>, %arg6: memref<3x16x1xf32, #tpu.memory_space<vmem>>, %arg7: memref<32x32xf32, #tpu.memory_space<vmem>>, %arg8: memref<96x32xf32, #tpu.memory_space<vmem>>) attributes {dimension_semantics = [], scalar_prefetch = 0 : i64, scratch_operands = 1 : i64, tpu.core_type = #tpu.core_type<tc>} {
    %c0 = arith.constant 0 : index
    %c0_0 = arith.constant 0 : index
    %0 = vector.load %arg1[%c0, %c0_0] : memref<32x1xi32, #tpu.memory_space<vmem>>, vector<32x1xi32>
    %1 = tpu.iota {dimensions = array<i32: 1>} : vector<32x8xi32>
    %2 = vector.broadcast %0 : vector<32x1xi32> to vector<32x8xi32>
    %3 = arith.cmpi eq, %2, %1 : vector<32x8xi32>
    %4 = arith.extui %3 : vector<32x8xi1> to vector<32x8xi32>
    %5 = arith.sitofp %4 : vector<32x8xi32> to vector<32x8xf32>
    %c0_1 = arith.constant 0 : index
    %c0_2 = arith.constant 0 : index
    %6 = vector.load %arg3[%c0_1, %c0_2] : memref<8x32xf32, #tpu.memory_space<vmem>>, vector<8x32xf32>
    %cst = arith.constant dense<0.000000e+00> : vector<32x32xf32>
    %7 = tpu.matmul %5, %6, %cst {dimension_numbers = #tpu.dot_dimension_numbers<[1], [0], [0], [1], [0, 0, 1, 1], [], []>} : vector<32x8xf32>, vector<8x32xf32>, vector<32x32xf32> -> vector<32x32xf32>
    %8 = tpu.iota {dimensions = array<i32: 0>} : vector<16x16xi32>
    %9 = tpu.iota {dimensions = array<i32: 1>} : vector<16x16xi32>
    %10 = arith.cmpi eq, %8, %9 : vector<16x16xi32>
    %11 = arith.extui %10 : vector<16x16xi1> to vector<16x16xi32>
    %12 = arith.sitofp %11 : vector<16x16xi32> to vector<16x16xf32>
    %13 = tpu.iota {dimensions = array<i32: 0>} : vector<16x32xi32>
    %14 = tpu.iota {dimensions = array<i32: 1>} : vector<16x32xi32>
    %c0_i32 = arith.constant 0 : i32
    %15 = vector.broadcast %c0_i32 : i32 to vector<16x32xi32>
    %16 = arith.addi %13, %15 : vector<16x32xi32>
    %17 = arith.cmpi eq, %14, %16 : vector<16x32xi32>
    %18 = arith.extui %17 : vector<16x32xi1> to vector<16x32xi32>
    %19 = arith.sitofp %18 : vector<16x32xi32> to vector<16x32xf32>
    %c0_3 = arith.constant 0 : index
    %c0_4 = arith.constant 0 : index
    %c0_5 = arith.constant 0 : index
    %c0_6 = arith.constant 0 : index
    %20 = vector.load %arg2[%c0_3, %c0_4, %c0_5, %c0_6] : memref<2x3x16x16xf32, #tpu.memory_space<vmem>>, vector<1x1x16x16xf32>
    %21 = vector.shape_cast %20 : vector<1x1x16x16xf32> to vector<16x16xf32>
    %22 = arith.addf %21, %12 : vector<16x16xf32>
    %cst_7 = arith.constant dense<0.000000e+00> : vector<16xf32>
    %23 = vector.multi_reduction <add>, %22, %cst_7 [1] : vector<16x16xf32> to vector<16xf32>
    %24 = vector.shape_cast %23 : vector<16xf32> to vector<16x1xf32>
    %25 = math.rsqrt %24 : vector<16x1xf32>
    %26 = vector.broadcast %25 : vector<16x1xf32> to vector<16x16xf32>
    %27 = arith.mulf %26, %22 : vector<16x16xf32>
    %28 = vector.broadcast %25 : vector<16x1xf32> to vector<16x32xf32>
    %29 = arith.mulf %28, %19 : vector<16x32xf32>
    %cst_8 = arith.constant dense<0.000000e+00> : vector<16x32xf32>
    %30 = tpu.matmul %27, %29, %cst_8 {dimension_numbers = #tpu.dot_dimension_numbers<[1], [0], [0], [1], [0, 0, 1, 1], [], []>} : vector<16x16xf32>, vector<16x32xf32>, vector<16x32xf32> -> vector<16x32xf32>
    %c0_9 = arith.constant 0 : index
    %c0_10 = arith.constant 0 : index
    %31 = vector.load %arg8[%c0_9, %c0_10] : memref<96x32xf32, #tpu.memory_space<vmem>>, vector<16x32xf32>
    tpu.vector_store %arg8[%c0_9, %c0_10], %30 {strides = array<i32>} : memref<96x32xf32, #tpu.memory_space<vmem>>, vector<16x32xf32>,
    %c0_11 = arith.constant 0 : index
    %c1 = arith.constant 1 : index
    %c0_12 = arith.constant 0 : index
    %c0_13 = arith.constant 0 : index
    %32 = vector.load %arg2[%c0_11, %c1, %c0_12, %c0_13] : memref<2x3x16x16xf32, #tpu.memory_space<vmem>>, vector<1x1x16x16xf32>
    %33 = vector.shape_cast %32 : vector<1x1x16x16xf32> to vector<16x16xf32>
    %34 = arith.addf %33, %12 : vector<16x16xf32>
    %cst_14 = arith.constant dense<0.000000e+00> : vector<16xf32>
    %35 = vector.multi_reduction <add>, %34, %cst_14 [1] : vector<16x16xf32> to vector<16xf32>
    %36 = vector.shape_cast %35 : vector<16xf32> to vector<16x1xf32>
    %37 = math.rsqrt %36 : vector<16x1xf32>
    %38 = vector.broadcast %37 : vector<16x1xf32> to vector<16x16xf32>
    %39 = arith.mulf %38, %34 : vector<16x16xf32>
    %40 = vector.broadcast %37 : vector<16x1xf32> to vector<16x32xf32>
    %41 = arith.mulf %40, %19 : vector<16x32xf32>
    %cst_15 = arith.constant dense<0.000000e+00> : vector<16x32xf32>
    %42 = tpu.matmul %39, %41, %cst_15 {dimension_numbers = #tpu.dot_dimension_numbers<[1], [0], [0], [1], [0, 0, 1, 1], [], []>} : vector<16x16xf32>, vector<16x32xf32>, vector<16x32xf32> -> vector<16x32xf32>
    %c32 = arith.constant 32 : index
    %c0_16 = arith.constant 0 : index
    %43 = vector.load %arg8[%c32, %c0_16] : memref<96x32xf32, #tpu.memory_space<vmem>>, vector<16x32xf32>
    tpu.vector_store %arg8[%c32, %c0_16], %42 {strides = array<i32>} : memref<96x32xf32, #tpu.memory_space<vmem>>, vector<16x32xf32>,
    %c0_17 = arith.constant 0 : index
    %c2 = arith.constant 2 : index
    %c0_18 = arith.constant 0 : index
    %c0_19 = arith.constant 0 : index
    %44 = vector.load %arg2[%c0_17, %c2, %c0_18, %c0_19] : memref<2x3x16x16xf32, #tpu.memory_space<vmem>>, vector<1x1x16x16xf32>
    %45 = vector.shape_cast %44 : vector<1x1x16x16xf32> to vector<16x16xf32>
    %46 = arith.addf %45, %12 : vector<16x16xf32>
    %cst_20 = arith.constant dense<0.000000e+00> : vector<16xf32>
    %47 = vector.multi_reduction <add>, %46, %cst_20 [1] : vector<16x16xf32> to vector<16xf32>
    %48 = vector.shape_cast %47 : vector<16xf32> to vector<16x1xf32>
    %49 = math.rsqrt %48 : vector<16x1xf32>
    %50 = vector.broadcast %49 : vector<16x1xf32> to vector<16x16xf32>
    %51 = arith.mulf %50, %46 : vector<16x16xf32>
    %52 = vector.broadcast %49 : vector<16x1xf32> to vector<16x32xf32>
    %53 = arith.mulf %52, %19 : vector<16x32xf32>
    %cst_21 = arith.constant dense<0.000000e+00> : vector<16x32xf32>
    %54 = tpu.matmul %51, %53, %cst_21 {dimension_numbers = #tpu.dot_dimension_numbers<[1], [0], [0], [1], [0, 0, 1, 1], [], []>} : vector<16x16xf32>, vector<16x32xf32>, vector<16x32xf32> -> vector<16x32xf32>
    %c64 = arith.constant 64 : index
    %c0_22 = arith.constant 0 : index
    %55 = vector.load %arg8[%c64, %c0_22] : memref<96x32xf32, #tpu.memory_space<vmem>>, vector<16x32xf32>
    tpu.vector_store %arg8[%c64, %c0_22], %54 {strides = array<i32>} : memref<96x32xf32, #tpu.memory_space<vmem>>, vector<16x32xf32>,
    %c16_i32 = arith.constant 16 : i32
    %56 = vector.broadcast %c16_i32 : i32 to vector<16x32xi32>
    %57 = arith.addi %13, %56 : vector<16x32xi32>
    %58 = arith.cmpi eq, %14, %57 : vector<16x32xi32>
    %59 = arith.extui %58 : vector<16x32xi1> to vector<16x32xi32>
    %60 = arith.sitofp %59 : vector<16x32xi32> to vector<16x32xf32>
    %c1_23 = arith.constant 1 : index
    %c0_24 = arith.constant 0 : index
    %c0_25 = arith.constant 0 : index
    %c0_26 = arith.constant 0 : index
    %61 = vector.load %arg2[%c1_23, %c0_24, %c0_25, %c0_26] : memref<2x3x16x16xf32, #tpu.memory_space<vmem>>, vector<1x1x16x16xf32>
    %62 = vector.shape_cast %61 : vector<1x1x16x16xf32> to vector<16x16xf32>
    %63 = arith.addf %62, %12 : vector<16x16xf32>
    %cst_27 = arith.constant dense<0.000000e+00> : vector<16xf32>
    %64 = vector.multi_reduction <add>, %63, %cst_27 [1] : vector<16x16xf32> to vector<16xf32>
    %65 = vector.shape_cast %64 : vector<16xf32> to vector<16x1xf32>
    %66 = math.rsqrt %65 : vector<16x1xf32>
    %67 = vector.broadcast %66 : vector<16x1xf32> to vector<16x16xf32>
    %68 = arith.mulf %67, %63 : vector<16x16xf32>
    %69 = vector.broadcast %66 : vector<16x1xf32> to vector<16x32xf32>
    %70 = arith.mulf %69, %60 : vector<16x32xf32>
    %cst_28 = arith.constant dense<0.000000e+00> : vector<16x32xf32>
    %71 = tpu.matmul %68, %70, %cst_28 {dimension_numbers = #tpu.dot_dimension_numbers<[1], [0], [0], [1], [0, 0, 1, 1], [], []>} : vector<16x16xf32>, vector<16x32xf32>, vector<16x32xf32> -> vector<16x32xf32>
    %c16 = arith.constant 16 : index
    %c0_29 = arith.constant 0 : index
    %72 = vector.load %arg8[%c16, %c0_29] : memref<96x32xf32, #tpu.memory_space<vmem>>, vector<16x32xf32>
    tpu.vector_store %arg8[%c16, %c0_29], %71 {strides = array<i32>} : memref<96x32xf32, #tpu.memory_space<vmem>>, vector<16x32xf32>,
    %c1_30 = arith.constant 1 : index
    %c1_31 = arith.constant 1 : index
    %c0_32 = arith.constant 0 : index
    %c0_33 = arith.constant 0 : index
    %73 = vector.load %arg2[%c1_30, %c1_31, %c0_32, %c0_33] : memref<2x3x16x16xf32, #tpu.memory_space<vmem>>, vector<1x1x16x16xf32>
    %74 = vector.shape_cast %73 : vector<1x1x16x16xf32> to vector<16x16xf32>
    %75 = arith.addf %74, %12 : vector<16x16xf32>
    %cst_34 = arith.constant dense<0.000000e+00> : vector<16xf32>
    %76 = vector.multi_reduction <add>, %75, %cst_34 [1] : vector<16x16xf32> to vector<16xf32>
    %77 = vector.shape_cast %76 : vector<16xf32> to vector<16x1xf32>
    %78 = math.rsqrt %77 : vector<16x1xf32>
    %79 = vector.broadcast %78 : vector<16x1xf32> to vector<16x16xf32>
    %80 = arith.mulf %79, %75 : vector<16x16xf32>
    %81 = vector.broadcast %78 : vector<16x1xf32> to vector<16x32xf32>
    %82 = arith.mulf %81, %60 : vector<16x32xf32>
    %cst_35 = arith.constant dense<0.000000e+00> : vector<16x32xf32>
    %83 = tpu.matmul %80, %82, %cst_35 {dimension_numbers = #tpu.dot_dimension_numbers<[1], [0], [0], [1], [0, 0, 1, 1], [], []>} : vector<16x16xf32>, vector<16x32xf32>, vector<16x32xf32> -> vector<16x32xf32>
    %c48 = arith.constant 48 : index
    %c0_36 = arith.constant 0 : index
    %84 = vector.load %arg8[%c48, %c0_36] : memref<96x32xf32, #tpu.memory_space<vmem>>, vector<16x32xf32>
    tpu.vector_store %arg8[%c48, %c0_36], %83 {strides = array<i32>} : memref<96x32xf32, #tpu.memory_space<vmem>>, vector<16x32xf32>,
    %c1_37 = arith.constant 1 : index
    %c2_38 = arith.constant 2 : index
    %c0_39 = arith.constant 0 : index
    %c0_40 = arith.constant 0 : index
    %85 = vector.load %arg2[%c1_37, %c2_38, %c0_39, %c0_40] : memref<2x3x16x16xf32, #tpu.memory_space<vmem>>, vector<1x1x16x16xf32>
    %86 = vector.shape_cast %85 : vector<1x1x16x16xf32> to vector<16x16xf32>
    %87 = arith.addf %86, %12 : vector<16x16xf32>
    %cst_41 = arith.constant dense<0.000000e+00> : vector<16xf32>
    %88 = vector.multi_reduction <add>, %87, %cst_41 [1] : vector<16x16xf32> to vector<16xf32>
    %89 = vector.shape_cast %88 : vector<16xf32> to vector<16x1xf32>
    %90 = math.rsqrt %89 : vector<16x1xf32>
    %91 = vector.broadcast %90 : vector<16x1xf32> to vector<16x16xf32>
    %92 = arith.mulf %91, %87 : vector<16x16xf32>
    %93 = vector.broadcast %90 : vector<16x1xf32> to vector<16x32xf32>
    %94 = arith.mulf %93, %60 : vector<16x32xf32>
    %cst_42 = arith.constant dense<0.000000e+00> : vector<16x32xf32>
    %95 = tpu.matmul %92, %94, %cst_42 {dimension_numbers = #tpu.dot_dimension_numbers<[1], [0], [0], [1], [0, 0, 1, 1], [], []>} : vector<16x16xf32>, vector<16x32xf32>, vector<16x32xf32> -> vector<16x32xf32>
    %c80 = arith.constant 80 : index
    %c0_43 = arith.constant 0 : index
    %96 = vector.load %arg8[%c80, %c0_43] : memref<96x32xf32, #tpu.memory_space<vmem>>, vector<16x32xf32>
    tpu.vector_store %arg8[%c80, %c0_43], %95 {strides = array<i32>} : memref<96x32xf32, #tpu.memory_space<vmem>>, vector<16x32xf32>,
    %c0_44 = arith.constant 0 : index
    %c0_45 = arith.constant 0 : index
    %97 = vector.load %arg8[%c0_44, %c0_45] : memref<96x32xf32, #tpu.memory_space<vmem>>, vector<96x32xf32>
    %cst_46 = arith.constant dense<0.000000e+00> : vector<96x32xf32>
    %98 = tpu.matmul %97, %7, %cst_46 {dimension_numbers = #tpu.dot_dimension_numbers<[1], [0], [0], [1], [0, 0, 1, 1], [], []>} : vector<96x32xf32>, vector<32x32xf32>, vector<96x32xf32> -> vector<96x32xf32>
    %cst_47 = arith.constant 0.000000e+00 : f32
    %99 = vector.broadcast %cst_47 : f32 to vector<32x32xf32>
    %100 = vector.extract_strided_slice %98 {offsets = [0, 0], sizes = [32, 32], strides = [1, 1]} : vector<96x32xf32> to vector<32x32xf32>
    %c0_48 = arith.constant 0 : index
    %c0_49 = arith.constant 0 : index
    %c0_50 = arith.constant 0 : index
    %c0_51 = arith.constant 0 : index
    %101 = vector.load %arg4[%c0_48, %c0_49, %c0_50, %c0_51] : memref<3x3x32x32xf32, #tpu.memory_space<vmem>>, vector<1x1x32x32xf32>
    %102 = vector.shape_cast %101 : vector<1x1x32x32xf32> to vector<32x32xf32>
    %cst_52 = arith.constant dense<0.000000e+00> : vector<32x32xf32>
    %103 = tpu.matmul %100, %102, %cst_52 {dimension_numbers = #tpu.dot_dimension_numbers<[1], [0], [0], [1], [0, 0, 1, 1], [], []>} : vector<32x32xf32>, vector<32x32xf32>, vector<32x32xf32> -> vector<32x32xf32>
    %c0_53 = arith.constant 0 : index
    %104 = memref.load %arg0[%c0_53] : memref<9xf32, #tpu.memory_space<smem>>
    %105 = math.tanh %103 : vector<32x32xf32>
    %106 = vector.broadcast %104 : f32 to vector<32x32xf32>
    %107 = arith.mulf %106, %105 : vector<32x32xf32>
    %108 = arith.addf %99, %107 : vector<32x32xf32>
    %109 = vector.extract_strided_slice %98 {offsets = [32, 0], sizes = [32, 32], strides = [1, 1]} : vector<96x32xf32> to vector<32x32xf32>
    %c0_54 = arith.constant 0 : index
    %c1_55 = arith.constant 1 : index
    %c0_56 = arith.constant 0 : index
    %c0_57 = arith.constant 0 : index
    %110 = vector.load %arg4[%c0_54, %c1_55, %c0_56, %c0_57] : memref<3x3x32x32xf32, #tpu.memory_space<vmem>>, vector<1x1x32x32xf32>
    %111 = vector.shape_cast %110 : vector<1x1x32x32xf32> to vector<32x32xf32>
    %cst_58 = arith.constant dense<0.000000e+00> : vector<32x32xf32>
    %112 = tpu.matmul %109, %111, %cst_58 {dimension_numbers = #tpu.dot_dimension_numbers<[1], [0], [0], [1], [0, 0, 1, 1], [], []>} : vector<32x32xf32>, vector<32x32xf32>, vector<32x32xf32> -> vector<32x32xf32>
    %c1_59 = arith.constant 1 : index
    %113 = memref.load %arg0[%c1_59] : memref<9xf32, #tpu.memory_space<smem>>
    %114 = math.tanh %112 : vector<32x32xf32>
    %115 = vector.broadcast %113 : f32 to vector<32x32xf32>
    %116 = arith.mulf %115, %114 : vector<32x32xf32>
    %117 = arith.addf %108, %116 : vector<32x32xf32>
    %118 = vector.extract_strided_slice %98 {offsets = [64, 0], sizes = [32, 32], strides = [1, 1]} : vector<96x32xf32> to vector<32x32xf32>
    %c0_60 = arith.constant 0 : index
    %c2_61 = arith.constant 2 : index
    %c0_62 = arith.constant 0 : index
    %c0_63 = arith.constant 0 : index
    %119 = vector.load %arg4[%c0_60, %c2_61, %c0_62, %c0_63] : memref<3x3x32x32xf32, #tpu.memory_space<vmem>>, vector<1x1x32x32xf32>
    %120 = vector.shape_cast %119 : vector<1x1x32x32xf32> to vector<32x32xf32>
    %cst_64 = arith.constant dense<0.000000e+00> : vector<32x32xf32>
    %121 = tpu.matmul %118, %120, %cst_64 {dimension_numbers = #tpu.dot_dimension_numbers<[1], [0], [0], [1], [0, 0, 1, 1], [], []>} : vector<32x32xf32>, vector<32x32xf32>, vector<32x32xf32> -> vector<32x32xf32>
    %c2_65 = arith.constant 2 : index
    %122 = memref.load %arg0[%c2_65] : memref<9xf32, #tpu.memory_space<smem>>
    %123 = math.tanh %121 : vector<32x32xf32>
    %124 = vector.broadcast %122 : f32 to vector<32x32xf32>
    %125 = arith.mulf %124, %123 : vector<32x32xf32>
    %126 = arith.addf %117, %125 : vector<32x32xf32>
    %cst_66 = arith.constant 0.000000e+00 : f32
    %127 = vector.broadcast %cst_66 : f32 to vector<16x1xf32>
    %128 = vector.extract_strided_slice %126 {offsets = [0, 0], sizes = [16, 32], strides = [1, 1]} : vector<32x32xf32> to vector<16x32xf32>
    %cst_67 = arith.constant dense<0.000000e+00> : vector<16xf32>
    %129 = vector.multi_reduction <add>, %128, %cst_67 [1] : vector<16x32xf32> to vector<16xf32>
    %130 = vector.shape_cast %129 : vector<16xf32> to vector<16x1xf32>
    %131 = arith.addf %127, %130 : vector<16x1xf32>
    %132 = vector.extract_strided_slice %126 {offsets = [16, 0], sizes = [16, 32], strides = [1, 1]} : vector<32x32xf32> to vector<16x32xf32>
    %cst_68 = arith.constant dense<0.000000e+00> : vector<16xf32>
    %133 = vector.multi_reduction <add>, %132, %cst_68 [1] : vector<16x32xf32> to vector<16xf32>
    %134 = vector.shape_cast %133 : vector<16xf32> to vector<16x1xf32>
    %135 = arith.addf %131, %134 : vector<16x1xf32>
    %cst_69 = arith.constant 1.562500e-02 : f32
    %136 = vector.broadcast %cst_69 : f32 to vector<16x1xf32>
    %137 = arith.mulf %135, %136 : vector<16x1xf32>
    %138 = vector.extract_strided_slice %126 {offsets = [0, 0], sizes = [16, 32], strides = [1, 1]} : vector<32x32xf32> to vector<16x32xf32>
    %139 = vector.broadcast %137 : vector<16x1xf32> to vector<16x32xf32>
    %140 = arith.subf %138, %139 : vector<16x32xf32>
    %141 = vector.extract_strided_slice %126 {offsets = [16, 0], sizes = [16, 32], strides = [1, 1]} : vector<32x32xf32> to vector<16x32xf32>
    %142 = vector.broadcast %137 : vector<16x1xf32> to vector<16x32xf32>
    %143 = arith.subf %141, %142 : vector<16x32xf32>
    %cst_70 = arith.constant 0.000000e+00 : f32
    %144 = vector.broadcast %cst_70 : f32 to vector<16x1xf32>
    %145 = arith.mulf %140, %140 : vector<16x32xf32>
    %cst_71 = arith.constant dense<0.000000e+00> : vector<16xf32>
    %146 = vector.multi_reduction <add>, %145, %cst_71 [1] : vector<16x32xf32> to vector<16xf32>
    %147 = vector.shape_cast %146 : vector<16xf32> to vector<16x1xf32>
    %148 = arith.addf %144, %147 : vector<16x1xf32>
    %149 = arith.mulf %143, %143 : vector<16x32xf32>
    %cst_72 = arith.constant dense<0.000000e+00> : vector<16xf32>
    %150 = vector.multi_reduction <add>, %149, %cst_72 [1] : vector<16x32xf32> to vector<16xf32>
    %151 = vector.shape_cast %150 : vector<16xf32> to vector<16x1xf32>
    %152 = arith.addf %148, %151 : vector<16x1xf32>
    %cst_73 = arith.constant 1.562500e-02 : f32
    %153 = vector.broadcast %cst_73 : f32 to vector<16x1xf32>
    %154 = arith.mulf %152, %153 : vector<16x1xf32>
    %cst_74 = arith.constant 9.99999974E-6 : f32
    %155 = vector.broadcast %cst_74 : f32 to vector<16x1xf32>
    %156 = arith.addf %154, %155 : vector<16x1xf32>
    %157 = math.rsqrt %156 : vector<16x1xf32>
    %c0_75 = arith.constant 0 : index
    %c0_76 = arith.constant 0 : index
    %c0_77 = arith.constant 0 : index
    %158 = vector.load %arg5[%c0_75, %c0_76, %c0_77] : memref<3x16x1xf32, #tpu.memory_space<vmem>>, vector<1x16x1xf32>
    %159 = vector.shape_cast %158 : vector<1x16x1xf32> to vector<16x1xf32>
    %160 = arith.mulf %157, %159 : vector<16x1xf32>
    %c0_78 = arith.constant 0 : index
    %c0_79 = arith.constant 0 : index
    %c0_80 = arith.constant 0 : index
    %161 = vector.load %arg6[%c0_78, %c0_79, %c0_80] : memref<3x16x1xf32, #tpu.memory_space<vmem>>, vector<1x16x1xf32>
    %162 = vector.shape_cast %161 : vector<1x16x1xf32> to vector<16x1xf32>
    %163 = vector.broadcast %160 : vector<16x1xf32> to vector<16x32xf32>
    %164 = arith.mulf %140, %163 : vector<16x32xf32>
    %165 = vector.broadcast %162 : vector<16x1xf32> to vector<16x32xf32>
    %166 = arith.addf %164, %165 : vector<16x32xf32>
    %c0_81 = arith.constant 0 : index
    %c0_82 = arith.constant 0 : index
    %167 = vector.load %arg7[%c0_81, %c0_82] : memref<32x32xf32, #tpu.memory_space<vmem>>, vector<16x32xf32>
    tpu.vector_store %arg7[%c0_81, %c0_82], %166 {strides = array<i32>} : memref<32x32xf32, #tpu.memory_space<vmem>>, vector<16x32xf32>,
    %168 = vector.broadcast %160 : vector<16x1xf32> to vector<16x32xf32>
    %169 = arith.mulf %143, %168 : vector<16x32xf32>
    %170 = vector.broadcast %162 : vector<16x1xf32> to vector<16x32xf32>
    %171 = arith.addf %169, %170 : vector<16x32xf32>
    %c16_83 = arith.constant 16 : index
    %c0_84 = arith.constant 0 : index
    %172 = vector.load %arg7[%c16_83, %c0_84] : memref<32x32xf32, #tpu.memory_space<vmem>>, vector<16x32xf32>
    tpu.vector_store %arg7[%c16_83, %c0_84], %171 {strides = array<i32>} : memref<32x32xf32, #tpu.memory_space<vmem>>, vector<16x32xf32>,
    %c0_85 = arith.constant 0 : index
    %c0_86 = arith.constant 0 : index
    %173 = vector.load %arg7[%c0_85, %c0_86] : memref<32x32xf32, #tpu.memory_space<vmem>>, vector<32x32xf32>
    %cst_87 = arith.constant dense<0.000000e+00> : vector<96x32xf32>
    %174 = tpu.matmul %97, %173, %cst_87 {dimension_numbers = #tpu.dot_dimension_numbers<[1], [0], [0], [1], [0, 0, 1, 1], [], []>} : vector<96x32xf32>, vector<32x32xf32>, vector<96x32xf32> -> vector<96x32xf32>
    %cst_88 = arith.constant 0.000000e+00 : f32
    %175 = vector.broadcast %cst_88 : f32 to vector<32x32xf32>
    %176 = vector.extract_strided_slice %174 {offsets = [0, 0], sizes = [32, 32], strides = [1, 1]} : vector<96x32xf32> to vector<32x32xf32>
    %c1_89 = arith.constant 1 : index
    %c0_90 = arith.constant 0 : index
    %c0_91 = arith.constant 0 : index
    %c0_92 = arith.constant 0 : index
    %177 = vector.load %arg4[%c1_89, %c0_90, %c0_91, %c0_92] : memref<3x3x32x32xf32, #tpu.memory_space<vmem>>, vector<1x1x32x32xf32>
    %178 = vector.shape_cast %177 : vector<1x1x32x32xf32> to vector<32x32xf32>
    %cst_93 = arith.constant dense<0.000000e+00> : vector<32x32xf32>
    %179 = tpu.matmul %176, %178, %cst_93 {dimension_numbers = #tpu.dot_dimension_numbers<[1], [0], [0], [1], [0, 0, 1, 1], [], []>} : vector<32x32xf32>, vector<32x32xf32>, vector<32x32xf32> -> vector<32x32xf32>
    %c3 = arith.constant 3 : index
    %180 = memref.load %arg0[%c3] : memref<9xf32, #tpu.memory_space<smem>>
    %181 = math.tanh %179 : vector<32x32xf32>
    %182 = vector.broadcast %180 : f32 to vector<32x32xf32>
    %183 = arith.mulf %182, %181 : vector<32x32xf32>
    %184 = arith.addf %175, %183 : vector<32x32xf32>
    %185 = vector.extract_strided_slice %174 {offsets = [32, 0], sizes = [32, 32], strides = [1, 1]} : vector<96x32xf32> to vector<32x32xf32>
    %c1_94 = arith.constant 1 : index
    %c1_95 = arith.constant 1 : index
    %c0_96 = arith.constant 0 : index
    %c0_97 = arith.constant 0 : index
    %186 = vector.load %arg4[%c1_94, %c1_95, %c0_96, %c0_97] : memref<3x3x32x32xf32, #tpu.memory_space<vmem>>, vector<1x1x32x32xf32>
    %187 = vector.shape_cast %186 : vector<1x1x32x32xf32> to vector<32x32xf32>
    %cst_98 = arith.constant dense<0.000000e+00> : vector<32x32xf32>
    %188 = tpu.matmul %185, %187, %cst_98 {dimension_numbers = #tpu.dot_dimension_numbers<[1], [0], [0], [1], [0, 0, 1, 1], [], []>} : vector<32x32xf32>, vector<32x32xf32>, vector<32x32xf32> -> vector<32x32xf32>
    %c4 = arith.constant 4 : index
    %189 = memref.load %arg0[%c4] : memref<9xf32, #tpu.memory_space<smem>>
    %190 = math.tanh %188 : vector<32x32xf32>
    %191 = vector.broadcast %189 : f32 to vector<32x32xf32>
    %192 = arith.mulf %191, %190 : vector<32x32xf32>
    %193 = arith.addf %184, %192 : vector<32x32xf32>
    %194 = vector.extract_strided_slice %174 {offsets = [64, 0], sizes = [32, 32], strides = [1, 1]} : vector<96x32xf32> to vector<32x32xf32>
    %c1_99 = arith.constant 1 : index
    %c2_100 = arith.constant 2 : index
    %c0_101 = arith.constant 0 : index
    %c0_102 = arith.constant 0 : index
    %195 = vector.load %arg4[%c1_99, %c2_100, %c0_101, %c0_102] : memref<3x3x32x32xf32, #tpu.memory_space<vmem>>, vector<1x1x32x32xf32>
    %196 = vector.shape_cast %195 : vector<1x1x32x32xf32> to vector<32x32xf32>
    %cst_103 = arith.constant dense<0.000000e+00> : vector<32x32xf32>
    %197 = tpu.matmul %194, %196, %cst_103 {dimension_numbers = #tpu.dot_dimension_numbers<[1], [0], [0], [1], [0, 0, 1, 1], [], []>} : vector<32x32xf32>, vector<32x32xf32>, vector<32x32xf32> -> vector<32x32xf32>
    %c5 = arith.constant 5 : index
    %198 = memref.load %arg0[%c5] : memref<9xf32, #tpu.memory_space<smem>>
    %199 = math.tanh %197 : vector<32x32xf32>
    %200 = vector.broadcast %198 : f32 to vector<32x32xf32>
    %201 = arith.mulf %200, %199 : vector<32x32xf32>
    %202 = arith.addf %193, %201 : vector<32x32xf32>
    %cst_104 = arith.constant 0.000000e+00 : f32
    %203 = vector.broadcast %cst_104 : f32 to vector<16x1xf32>
    %204 = vector.extract_strided_slice %202 {offsets = [0, 0], sizes = [16, 32], strides = [1, 1]} : vector<32x32xf32> to vector<16x32xf32>
    %cst_105 = arith.constant dense<0.000000e+00> : vector<16xf32>
    %205 = vector.multi_reduction <add>, %204, %cst_105 [1] : vector<16x32xf32> to vector<16xf32>
    %206 = vector.shape_cast %205 : vector<16xf32> to vector<16x1xf32>
    %207 = arith.addf %203, %206 : vector<16x1xf32>
    %208 = vector.extract_strided_slice %202 {offsets = [16, 0], sizes = [16, 32], strides = [1, 1]} : vector<32x32xf32> to vector<16x32xf32>
    %cst_106 = arith.constant dense<0.000000e+00> : vector<16xf32>
    %209 = vector.multi_reduction <add>, %208, %cst_106 [1] : vector<16x32xf32> to vector<16xf32>
    %210 = vector.shape_cast %209 : vector<16xf32> to vector<16x1xf32>
    %211 = arith.addf %207, %210 : vector<16x1xf32>
    %cst_107 = arith.constant 1.562500e-02 : f32
    %212 = vector.broadcast %cst_107 : f32 to vector<16x1xf32>
    %213 = arith.mulf %211, %212 : vector<16x1xf32>
    %214 = vector.extract_strided_slice %202 {offsets = [0, 0], sizes = [16, 32], strides = [1, 1]} : vector<32x32xf32> to vector<16x32xf32>
    %215 = vector.broadcast %213 : vector<16x1xf32> to vector<16x32xf32>
    %216 = arith.subf %214, %215 : vector<16x32xf32>
    %217 = vector.extract_strided_slice %202 {offsets = [16, 0], sizes = [16, 32], strides = [1, 1]} : vector<32x32xf32> to vector<16x32xf32>
    %218 = vector.broadcast %213 : vector<16x1xf32> to vector<16x32xf32>
    %219 = arith.subf %217, %218 : vector<16x32xf32>
    %cst_108 = arith.constant 0.000000e+00 : f32
    %220 = vector.broadcast %cst_108 : f32 to vector<16x1xf32>
    %221 = arith.mulf %216, %216 : vector<16x32xf32>
    %cst_109 = arith.constant dense<0.000000e+00> : vector<16xf32>
    %222 = vector.multi_reduction <add>, %221, %cst_109 [1] : vector<16x32xf32> to vector<16xf32>
    %223 = vector.shape_cast %222 : vector<16xf32> to vector<16x1xf32>
    %224 = arith.addf %220, %223 : vector<16x1xf32>
    %225 = arith.mulf %219, %219 : vector<16x32xf32>
    %cst_110 = arith.constant dense<0.000000e+00> : vector<16xf32>
    %226 = vector.multi_reduction <add>, %225, %cst_110 [1] : vector<16x32xf32> to vector<16xf32>
    %227 = vector.shape_cast %226 : vector<16xf32> to vector<16x1xf32>
    %228 = arith.addf %224, %227 : vector<16x1xf32>
    %cst_111 = arith.constant 1.562500e-02 : f32
    %229 = vector.broadcast %cst_111 : f32 to vector<16x1xf32>
    %230 = arith.mulf %228, %229 : vector<16x1xf32>
    %cst_112 = arith.constant 9.99999974E-6 : f32
    %231 = vector.broadcast %cst_112 : f32 to vector<16x1xf32>
    %232 = arith.addf %230, %231 : vector<16x1xf32>
    %233 = math.rsqrt %232 : vector<16x1xf32>
    %c1_113 = arith.constant 1 : index
    %c0_114 = arith.constant 0 : index
    %c0_115 = arith.constant 0 : index
    %234 = vector.load %arg5[%c1_113, %c0_114, %c0_115] : memref<3x16x1xf32, #tpu.memory_space<vmem>>, vector<1x16x1xf32>
    %235 = vector.shape_cast %234 : vector<1x16x1xf32> to vector<16x1xf32>
    %236 = arith.mulf %233, %235 : vector<16x1xf32>
    %c1_116 = arith.constant 1 : index
    %c0_117 = arith.constant 0 : index
    %c0_118 = arith.constant 0 : index
    %237 = vector.load %arg6[%c1_116, %c0_117, %c0_118] : memref<3x16x1xf32, #tpu.memory_space<vmem>>, vector<1x16x1xf32>
    %238 = vector.shape_cast %237 : vector<1x16x1xf32> to vector<16x1xf32>
    %239 = vector.broadcast %236 : vector<16x1xf32> to vector<16x32xf32>
    %240 = arith.mulf %216, %239 : vector<16x32xf32>
    %241 = vector.broadcast %238 : vector<16x1xf32> to vector<16x32xf32>
    %242 = arith.addf %240, %241 : vector<16x32xf32>
    %c0_119 = arith.constant 0 : index
    %c0_120 = arith.constant 0 : index
    %243 = vector.load %arg7[%c0_119, %c0_120] : memref<32x32xf32, #tpu.memory_space<vmem>>, vector<16x32xf32>
    tpu.vector_store %arg7[%c0_119, %c0_120], %242 {strides = array<i32>} : memref<32x32xf32, #tpu.memory_space<vmem>>, vector<16x32xf32>,
    %244 = vector.broadcast %236 : vector<16x1xf32> to vector<16x32xf32>
    %245 = arith.mulf %219, %244 : vector<16x32xf32>
    %246 = vector.broadcast %238 : vector<16x1xf32> to vector<16x32xf32>
    %247 = arith.addf %245, %246 : vector<16x32xf32>
    %c16_121 = arith.constant 16 : index
    %c0_122 = arith.constant 0 : index
    %248 = vector.load %arg7[%c16_121, %c0_122] : memref<32x32xf32, #tpu.memory_space<vmem>>, vector<16x32xf32>
    tpu.vector_store %arg7[%c16_121, %c0_122], %247 {strides = array<i32>} : memref<32x32xf32, #tpu.memory_space<vmem>>, vector<16x32xf32>,
    %c0_123 = arith.constant 0 : index
    %c0_124 = arith.constant 0 : index
    %249 = vector.load %arg7[%c0_123, %c0_124] : memref<32x32xf32, #tpu.memory_space<vmem>>, vector<32x32xf32>
    %cst_125 = arith.constant dense<0.000000e+00> : vector<96x32xf32>
    %250 = tpu.matmul %97, %249, %cst_125 {dimension_numbers = #tpu.dot_dimension_numbers<[1], [0], [0], [1], [0, 0, 1, 1], [], []>} : vector<96x32xf32>, vector<32x32xf32>, vector<96x32xf32> -> vector<96x32xf32>
    %cst_126 = arith.constant 0.000000e+00 : f32
    %251 = vector.broadcast %cst_126 : f32 to vector<32x32xf32>
    %252 = vector.extract_strided_slice %250 {offsets = [0, 0], sizes = [32, 32], strides = [1, 1]} : vector<96x32xf32> to vector<32x32xf32>
    %c2_127 = arith.constant 2 : index
    %c0_128 = arith.constant 0 : index
    %c0_129 = arith.constant 0 : index
    %c0_130 = arith.constant 0 : index
    %253 = vector.load %arg4[%c2_127, %c0_128, %c0_129, %c0_130] : memref<3x3x32x32xf32, #tpu.memory_space<vmem>>, vector<1x1x32x32xf32>
    %254 = vector.shape_cast %253 : vector<1x1x32x32xf32> to vector<32x32xf32>
    %cst_131 = arith.constant dense<0.000000e+00> : vector<32x32xf32>
    %255 = tpu.matmul %252, %254, %cst_131 {dimension_numbers = #tpu.dot_dimension_numbers<[1], [0], [0], [1], [0, 0, 1, 1], [], []>} : vector<32x32xf32>, vector<32x32xf32>, vector<32x32xf32> -> vector<32x32xf32>
    %c6 = arith.constant 6 : index
    %256 = memref.load %arg0[%c6] : memref<9xf32, #tpu.memory_space<smem>>
    %257 = math.tanh %255 : vector<32x32xf32>
    %258 = vector.broadcast %256 : f32 to vector<32x32xf32>
    %259 = arith.mulf %258, %257 : vector<32x32xf32>
    %260 = arith.addf %251, %259 : vector<32x32xf32>
    %261 = vector.extract_strided_slice %250 {offsets = [32, 0], sizes = [32, 32], strides = [1, 1]} : vector<96x32xf32> to vector<32x32xf32>
    %c2_132 = arith.constant 2 : index
    %c1_133 = arith.constant 1 : index
    %c0_134 = arith.constant 0 : index
    %c0_135 = arith.constant 0 : index
    %262 = vector.load %arg4[%c2_132, %c1_133, %c0_134, %c0_135] : memref<3x3x32x32xf32, #tpu.memory_space<vmem>>, vector<1x1x32x32xf32>
    %263 = vector.shape_cast %262 : vector<1x1x32x32xf32> to vector<32x32xf32>
    %cst_136 = arith.constant dense<0.000000e+00> : vector<32x32xf32>
    %264 = tpu.matmul %261, %263, %cst_136 {dimension_numbers = #tpu.dot_dimension_numbers<[1], [0], [0], [1], [0, 0, 1, 1], [], []>} : vector<32x32xf32>, vector<32x32xf32>, vector<32x32xf32> -> vector<32x32xf32>
    %c7 = arith.constant 7 : index
    %265 = memref.load %arg0[%c7] : memref<9xf32, #tpu.memory_space<smem>>
    %266 = math.tanh %264 : vector<32x32xf32>
    %267 = vector.broadcast %265 : f32 to vector<32x32xf32>
    %268 = arith.mulf %267, %266 : vector<32x32xf32>
    %269 = arith.addf %260, %268 : vector<32x32xf32>
    %270 = vector.extract_strided_slice %250 {offsets = [64, 0], sizes = [32, 32], strides = [1, 1]} : vector<96x32xf32> to vector<32x32xf32>
    %c2_137 = arith.constant 2 : index
    %c2_138 = arith.constant 2 : index
    %c0_139 = arith.constant 0 : index
    %c0_140 = arith.constant 0 : index
    %271 = vector.load %arg4[%c2_137, %c2_138, %c0_139, %c0_140] : memref<3x3x32x32xf32, #tpu.memory_space<vmem>>, vector<1x1x32x32xf32>
    %272 = vector.shape_cast %271 : vector<1x1x32x32xf32> to vector<32x32xf32>
    %cst_141 = arith.constant dense<0.000000e+00> : vector<32x32xf32>
    %273 = tpu.matmul %270, %272, %cst_141 {dimension_numbers = #tpu.dot_dimension_numbers<[1], [0], [0], [1], [0, 0, 1, 1], [], []>} : vector<32x32xf32>, vector<32x32xf32>, vector<32x32xf32> -> vector<32x32xf32>
    %c8 = arith.constant 8 : index
    %274 = memref.load %arg0[%c8] : memref<9xf32, #tpu.memory_space<smem>>
    %275 = math.tanh %273 : vector<32x32xf32>
    %276 = vector.broadcast %274 : f32 to vector<32x32xf32>
    %277 = arith.mulf %276, %275 : vector<32x32xf32>
    %278 = arith.addf %269, %277 : vector<32x32xf32>
    %cst_142 = arith.constant 0.000000e+00 : f32
    %279 = vector.broadcast %cst_142 : f32 to vector<16x1xf32>
    %280 = vector.extract_strided_slice %278 {offsets = [0, 0], sizes = [16, 32], strides = [1, 1]} : vector<32x32xf32> to vector<16x32xf32>
    %cst_143 = arith.constant dense<0.000000e+00> : vector<16xf32>
    %281 = vector.multi_reduction <add>, %280, %cst_143 [1] : vector<16x32xf32> to vector<16xf32>
    %282 = vector.shape_cast %281 : vector<16xf32> to vector<16x1xf32>
    %283 = arith.addf %279, %282 : vector<16x1xf32>
    %284 = vector.extract_strided_slice %278 {offsets = [16, 0], sizes = [16, 32], strides = [1, 1]} : vector<32x32xf32> to vector<16x32xf32>
    %cst_144 = arith.constant dense<0.000000e+00> : vector<16xf32>
    %285 = vector.multi_reduction <add>, %284, %cst_144 [1] : vector<16x32xf32> to vector<16xf32>
    %286 = vector.shape_cast %285 : vector<16xf32> to vector<16x1xf32>
    %287 = arith.addf %283, %286 : vector<16x1xf32>
    %cst_145 = arith.constant 1.562500e-02 : f32
    %288 = vector.broadcast %cst_145 : f32 to vector<16x1xf32>
    %289 = arith.mulf %287, %288 : vector<16x1xf32>
    %290 = vector.extract_strided_slice %278 {offsets = [0, 0], sizes = [16, 32], strides = [1, 1]} : vector<32x32xf32> to vector<16x32xf32>
    %291 = vector.broadcast %289 : vector<16x1xf32> to vector<16x32xf32>
    %292 = arith.subf %290, %291 : vector<16x32xf32>
    %293 = vector.extract_strided_slice %278 {offsets = [16, 0], sizes = [16, 32], strides = [1, 1]} : vector<32x32xf32> to vector<16x32xf32>
    %294 = vector.broadcast %289 : vector<16x1xf32> to vector<16x32xf32>
    %295 = arith.subf %293, %294 : vector<16x32xf32>
    %cst_146 = arith.constant 0.000000e+00 : f32
    %296 = vector.broadcast %cst_146 : f32 to vector<16x1xf32>
    %297 = arith.mulf %292, %292 : vector<16x32xf32>
    %cst_147 = arith.constant dense<0.000000e+00> : vector<16xf32>
    %298 = vector.multi_reduction <add>, %297, %cst_147 [1] : vector<16x32xf32> to vector<16xf32>
    %299 = vector.shape_cast %298 : vector<16xf32> to vector<16x1xf32>
    %300 = arith.addf %296, %299 : vector<16x1xf32>
    %301 = arith.mulf %295, %295 : vector<16x32xf32>
    %cst_148 = arith.constant dense<0.000000e+00> : vector<16xf32>
    %302 = vector.multi_reduction <add>, %301, %cst_148 [1] : vector<16x32xf32> to vector<16xf32>
    %303 = vector.shape_cast %302 : vector<16xf32> to vector<16x1xf32>
    %304 = arith.addf %300, %303 : vector<16x1xf32>
    %cst_149 = arith.constant 1.562500e-02 : f32
    %305 = vector.broadcast %cst_149 : f32 to vector<16x1xf32>
    %306 = arith.mulf %304, %305 : vector<16x1xf32>
    %cst_150 = arith.constant 9.99999974E-6 : f32
    %307 = vector.broadcast %cst_150 : f32 to vector<16x1xf32>
    %308 = arith.addf %306, %307 : vector<16x1xf32>
    %309 = math.rsqrt %308 : vector<16x1xf32>
    %c2_151 = arith.constant 2 : index
    %c0_152 = arith.constant 0 : index
    %c0_153 = arith.constant 0 : index
    %310 = vector.load %arg5[%c2_151, %c0_152, %c0_153] : memref<3x16x1xf32, #tpu.memory_space<vmem>>, vector<1x16x1xf32>
    %311 = vector.shape_cast %310 : vector<1x16x1xf32> to vector<16x1xf32>
    %312 = arith.mulf %309, %311 : vector<16x1xf32>
    %c2_154 = arith.constant 2 : index
    %c0_155 = arith.constant 0 : index
    %c0_156 = arith.constant 0 : index
    %313 = vector.load %arg6[%c2_154, %c0_155, %c0_156] : memref<3x16x1xf32, #tpu.memory_space<vmem>>, vector<1x16x1xf32>
    %314 = vector.shape_cast %313 : vector<1x16x1xf32> to vector<16x1xf32>
    %315 = vector.broadcast %312 : vector<16x1xf32> to vector<16x32xf32>
    %316 = arith.mulf %292, %315 : vector<16x32xf32>
    %317 = vector.broadcast %314 : vector<16x1xf32> to vector<16x32xf32>
    %318 = arith.addf %316, %317 : vector<16x32xf32>
    %c0_157 = arith.constant 0 : index
    %c0_158 = arith.constant 0 : index
    %319 = vector.load %arg7[%c0_157, %c0_158] : memref<32x32xf32, #tpu.memory_space<vmem>>, vector<16x32xf32>
    tpu.vector_store %arg7[%c0_157, %c0_158], %318 {strides = array<i32>} : memref<32x32xf32, #tpu.memory_space<vmem>>, vector<16x32xf32>,
    %320 = vector.broadcast %312 : vector<16x1xf32> to vector<16x32xf32>
    %321 = arith.mulf %295, %320 : vector<16x32xf32>
    %322 = vector.broadcast %314 : vector<16x1xf32> to vector<16x32xf32>
    %323 = arith.addf %321, %322 : vector<16x32xf32>
    %c16_159 = arith.constant 16 : index
    %c0_160 = arith.constant 0 : index
    %324 = vector.load %arg7[%c16_159, %c0_160] : memref<32x32xf32, #tpu.memory_space<vmem>>, vector<16x32xf32>
    tpu.vector_store %arg7[%c16_159, %c0_160], %323 {strides = array<i32>} : memref<32x32xf32, #tpu.memory_space<vmem>>, vector<16x32xf32>,
    return
  }
}

</mosaic_0001>

<llo_original>
// kernel: gcn2_forward.1
$region0: #{gcn2_forward.1}
  #allocation0 [shape = 'u32[]', space=smem, size = 0x4, offset = 0x4, fixed_abs, tag = 'smem constant byte address 0x4 - core index']
  #allocation1 [shape = 'u32[72,128]{1,0:T(1,128)}', space=vmem, size = 0x9000, scoped, tag = 'internal scratch']
  #allocation2 [shape = 'f32[96,32]{1,0:T(8,128)}', space=vmem, size = 0xc000, scoped, tag = 'scratch operand']
  %s0 = inlined_call_operand.vmem [shape: f32[9], index: 0, kind: input, shape index: {}]
  %s1 = inlined_call_operand.vmem [shape: s32[32,1], index: 1, kind: input, shape index: {}]
  %s2 = inlined_call_operand.vmem [shape: f32[2,3,16,16], index: 2, kind: input, shape index: {}]
  %s3 = inlined_call_operand.vmem [shape: f32[8,32], index: 3, kind: input, shape index: {}]
  %s4 = inlined_call_operand.hbm [shape: f32[3,3,32,32], index: 4, kind: input, shape index: {}]
  %s5 = inlined_call_operand.vmem [shape: f32[3,16,1], index: 5, kind: input, shape index: {}]
  %s6 = inlined_call_operand.vmem [shape: f32[3,16,1], index: 6, kind: input, shape index: {}]
  %s7 = inlined_call_operand.hbm [shape: f32[32,32], index: 7, kind: output, shape index: {}]
  %s8 = sld [smem:[#allocation0]]
  $region46: #{gcn2_forward.1} parent=0
    _
  %s10 = ssub.s32 1, %s8
  %s11 = scalar_select 0, %s10, %s8
  $region1: #{gcn2_forward.1} parent=0
    #allocation3 [shape = 'u8[512]{0}', space=smem, size = 0x200, scoped, tag = 'input window, operand 0, single buffered']
    #allocation4 [shape = 's32[1]{0}', space=sflag, size = 0x4, scoped, tag = 'scoped memory for gcn2_forward.1']
    #allocation5 [shape = 's32[1]{0}', space=sflag, size = 0x4, scoped, tag = 'scoped memory for gcn2_forward.1']
    #allocation6 [shape = 's32[1]{0}', space=sflag, size = 0x4, scoped, tag = 'scoped memory for gcn2_forward.1']
    #allocation7 [shape = 'u8[147456]{0}', space=vmem, size = 0x24000, scoped, tag = 'input window, operand 4, single buffered']
    #allocation8 [shape = 'u8[16384]{0}', space=vmem, size = 0x4000, scoped, tag = 'output window, operand 0, single buffered']
    %12 = vsyncpa [#allocation6], 0
    %13 = vsyncpa [#allocation4], 0
    %14 = vsyncpa [#allocation5], 0
    // Predicated region
    $region2: #{gcn2_forward.1} parent=1 // pred_check
      _
    $region3: #{gcn2_forward.1} parent=1 // pred_check_branch
      %16 = sbr.rel (0) target = $region5
    $region4: #{gcn2_forward.1} parent=1 // pred_region
      %18 = vsyncadd [#allocation6], 0
      %s20 = sshll.u32 %s0, 4
      %s21 = int_to_ptr.vmem [resolvable:$true] %s20
      %23 = dma.vmem_to_smem %s21, 16, [#allocation3], [#allocation6]
    $region5: #{gcn2_forward.1} parent=1 // pred_fallthru
      _
    // Predicated region
    $region6: #{gcn2_forward.1} parent=1 // pred_check
      _
    $region7: #{gcn2_forward.1} parent=1 // pred_check_branch
      %25 = sbr.rel (0) target = $region9
    $region8: #{gcn2_forward.1} parent=1 // pred_region
      _
    $region9: #{gcn2_forward.1} parent=1 // pred_fallthru
      _
    // Predicated region
    $region10: #{gcn2_forward.1} parent=1 // pred_check
      _
    $region11: #{gcn2_forward.1} parent=1 // pred_check_branch
      %27 = sbr.rel (0) target = $region13
    $region12: #{gcn2_forward.1} parent=1 // pred_region
      _
    $region13: #{gcn2_forward.1} parent=1 // pred_fallthru
      _
    // Predicated region
    $region14: #{gcn2_forward.1} parent=1 // pred_check
      _
    $region15: #{gcn2_forward.1} parent=1 // pred_check_branch
      %29 = sbr.rel (0) target = $region17
    $region16: #{gcn2_forward.1} parent=1 // pred_region
      _
    $region17: #{gcn2_forward.1} parent=1 // pred_fallthru
      _
    // Predicated region
    $region18: #{gcn2_forward.1} parent=1 // pred_check
      _
    $region19: #{gcn2_forward.1} parent=1 // pred_check_branch
      %31 = sbr.rel (0) target = $region21
    $region20: #{gcn2_forward.1} parent=1 // pred_region
      %33 = vsyncadd [#allocation4], 0
      %s34 = sshll.u32 %s4, 4
      %s35 = int_to_ptr.hbm [resolvable:$true] %s34
      %s36 = sshll.u32 [#allocation7], 4
      %s37 = int_to_ptr.vmem [resolvable:$true] %s36
      %42 = dma.hbm_to_vmem [thread:$0]  %s35, 4608, %s37, [#allocation4], 128, 128, 8
    $region21: #{gcn2_forward.1} parent=1 // pred_fallthru
      _
    // Predicated region
    $region22: #{gcn2_forward.1} parent=1 // pred_check
      _
    $region23: #{gcn2_forward.1} parent=1 // pred_check_branch
      %44 = sbr.rel (0) target = $region25
    $region24: #{gcn2_forward.1} parent=1 // pred_region
      _
    $region25: #{gcn2_forward.1} parent=1 // pred_fallthru
      _
    // Predicated region
    $region26: #{gcn2_forward.1} parent=1 // pred_check
      _
    $region27: #{gcn2_forward.1} parent=1 // pred_check_branch
      %46 = sbr.rel (0) target = $region29
    $region28: #{gcn2_forward.1} parent=1 // pred_region
      _
    $region29: #{gcn2_forward.1} parent=1 // pred_fallthru
      _
    // Predicated region
    $region30: #{gcn2_forward.1} parent=1 // pred_check
      _
    $region31: #{gcn2_forward.1} parent=1 // pred_check_branch
      %48 = sbr.rel (0) target = $region33
    $region32: #{gcn2_forward.1} parent=1 // pred_region
      %50 = dma.done [#allocation6], 16
    $region33: #{gcn2_forward.1} parent=1 // pred_fallthru
      _
    // Predicated region
    $region34: #{gcn2_forward.1} parent=1 // pred_check
      _
    $region35: #{gcn2_forward.1} parent=1 // pred_check_branch
      %52 = sbr.rel (0) target = $region37
    $region36: #{gcn2_forward.1} parent=1 // pred_region
      %54 = dma.done [#allocation4], 4608
    $region37: #{gcn2_forward.1} parent=1 // pred_fallthru
      _
    %55 = sfence
    %v56 = vld [vmem:[%s1] sm:$0xff]
    %v57 = vld [vmem:[%s1 + $0x8] sm:$0xff]
    %v58 = vld [vmem:[%s1 + $0x10] sm:$0xff]
    %v59 = vld [vmem:[%s1 + $0x18] sm:$0xff]
    %v60 = vlaneseq
    %v61 = vand.u32 %v60, 127
    %62 = vset.pattern.permute.xlu0 0
    %63 = vperm.xlu0 %62, %v56
    %v64 = vpop.permute.xlu0 %63
    %65 = vset.pattern.permute.xlu0 0
    %66 = vperm.xlu0 %65, %v57
    %v67 = vpop.permute.xlu0 %66
    %68 = vset.pattern.permute.xlu0 0
    %69 = vperm.xlu0 %68, %v58
    %v70 = vpop.permute.xlu0 %69
    %71 = vset.pattern.permute.xlu0 0
    %72 = vperm.xlu0 %71, %v59
    %v73 = vpop.permute.xlu0 %72
    %vm74 = vcmp.eq.s32.totalorder %v64, %v61
    %vm75 = vcmp.eq.s32.totalorder %v67, %v61
    %vm76 = vcmp.eq.s32.totalorder %v70, %v61
    %vm77 = vcmp.eq.s32.totalorder %v73, %v61
    %v78 = vsel %vm74, 1, 0
    %v79 = vsel %vm75, 1, 0
    %v80 = vsel %vm76, 1, 0
    %v81 = vsel %vm77, 1, 0
    %v82 = vcvt.s32.f32 %v78
    %v83 = vcvt.s32.f32 %v79
    %v84 = vcvt.s32.f32 %v80
    %v85 = vcvt.s32.f32 %v81
    %v86 = vld [vmem:[%s3] sm:$0xff]
    %vm87 = vcmask 64512
    %v89 = vsel %vm87, %v82, 0
    %v92 = vsel %vm87, %v83, 0
    %v95 = vsel %vm87, %v84, 0
    %v98 = vsel %vm87, %v85, 0
    %100 = vmatpush.msra.mxu0 0.0
    %101 = vmatpush.msra.mxu0 0.0
    %102 = vmatpush.msra.mxu0 0.0
    %103 = vmatpush.msra.mxu0 0.0
    %104 = vmatpush.msra.mxu0 0.0
    %105 = vmatpush.msra.mxu0 0.0
    %106 = vmatpush.msra.mxu0 0.0
    %107 = vmatpush.msra.mxu0 0.0
    %108 = vmatpush.msra.mxu0 0.0
    %109 = vmatpush.msra.mxu0 0.0
    %110 = vmatpush.msra.mxu0 0.0
    %111 = vmatpush.msra.mxu0 0.0
    %112 = vmatpush.msra.mxu0 0.0
    %113 = vmatpush.msra.mxu0 0.0
    %114 = vmatpush.msra.mxu0 0.0
    %115 = vmatpush.msra.mxu0 %v86
    %116 = vmatmul.f32.gmra.mxu0 %v89
    %v117 = vpop.f32.mrf.mxu0
    %v118 = vadd.f32 0.0, %v117
    %119 = vmatmul.f32.gmra.mxu0 %v92
    %v120 = vpop.f32.mrf.mxu0
    %v121 = vadd.f32 0.0, %v120
    %122 = vmatmul.f32.gmra.mxu0 %v95
    %v123 = vpop.f32.mrf.mxu0
    %v124 = vadd.f32 0.0, %v123
    %125 = vmatmul.f32.gmra.mxu0 %v98
    %v126 = vpop.f32.mrf.mxu0
    %v127 = vadd.f32 0.0, %v126
    %128 = vdwg.mxu0
    %v129 = vlaneseq
    %v130 = vshrl.u32 %v129, 7
    %v131 = vadd.s32 %v130, 8
    %vm132 = vcmp.eq.s32.totalorder %v130, %v61
    %vm133 = vcmp.eq.s32.totalorder %v131, %v61
    %v134 = vsel %vm132, 1, 0
    %v135 = vsel %vm133, 1, 0
    %v136 = vcvt.s32.f32 %v134
    %v137 = vcvt.s32.f32 %v135
    %vm138 = vcmp.eq.s32.totalorder %v61, %v130
    %vm139 = vcmp.eq.s32.totalorder %v61, %v131
    %v140 = vsel %vm138, 1, 0
    %v141 = vsel %vm139, 1, 0
    %v142 = vcvt.s32.f32 %v140
    %v143 = vcvt.s32.f32 %v141
    %v144 = vld [vmem:[%s2] sm:$0xff]
    %v145 = vld [vmem:[%s2 + $0x8] sm:$0xff]
    %v146 = vadd.f32 %v144, %v136
    %v147 = vadd.f32 %v145, %v137
    %vm148 = vcmask 130048
    %v149 = vsel %vm148, %v146, 0.0
    %150 = vadd.xlane.f32.xlu0 %v149
    %v151 = vpop.xlane.xlu0 %150
    %v152 = vsel %vm148, %v147, 0.0
    %153 = vadd.xlane.f32.xlu0 %v152
    %v154 = vpop.xlane.xlu0 %153
    %v155 = vrsqrt.pop %v151
    %v156 = vmul.f32 %v155, %v151
    %v157 = vmul.f32 %v156, %v155
    %v158 = vmul.f32 0.5, %v157
    %v159 = vsub.f32 1.5, %v158
    %v160 = vmul.f32 %v155, %v159
    %vm161 = vweird.f32 %v151
    %vm162 = vweird.f32 %v155
    %vm163 = vmor %vm161, %vm162
    %v164 = vsel %vm163, %v155, %v160
    %v165 = vrsqrt.pop %v154
    %v166 = vmul.f32 %v165, %v154
    %v167 = vmul.f32 %v166, %v165
    %v168 = vmul.f32 0.5, %v167
    %v169 = vsub.f32 1.5, %v168
    %v170 = vmul.f32 %v165, %v169
    %vm171 = vweird.f32 %v154
    %vm172 = vweird.f32 %v165
    %vm173 = vmor %vm171, %vm172
    %v174 = vsel %vm173, %v165, %v170
    %v175 = vmul.f32 %v164, %v146
    %v176 = vmul.f32 %v174, %v147
    %v177 = vmul.f32 %v164, %v142
    %v178 = vmul.f32 %v174, %v143
    %v180 = vsel %vm148, %v175, 0
    %v183 = vsel %vm148, %v176, 0
    %185 = vmatpush.msra.mxu0 0.0
    %186 = vmatpush.msra.mxu0 0.0
    %187 = vmatpush.msra.mxu0 0.0
    %188 = vmatpush.msra.mxu0 0.0
    %189 = vmatpush.msra.mxu0 0.0
    %190 = vmatpush.msra.mxu0 0.0
    %191 = vmatpush.msra.mxu0 0.0
    %192 = vmatpush.msra.mxu0 0.0
    %193 = vmatpush.msra.mxu0 0.0
    %194 = vmatpush.msra.mxu0 0.0
    %195 = vmatpush.msra.mxu0 0.0
    %196 = vmatpush.msra.mxu0 0.0
    %197 = vmatpush.msra.mxu0 0.0
    %198 = vmatpush.msra.mxu0 0.0
    %199 = vmatpush.msra.mxu0 %v178
    %200 = vmatpush.msra.mxu0 %v177
    %201 = vmatmul.f32.gmra.mxu0 %v180
    %v202 = vpop.f32.mrf.mxu0
    %v203 = vadd.f32 0.0, %v202
    %204 = vmatmul.f32.gmra.mxu0 %v183
    %v205 = vpop.f32.mrf.mxu0
    %v206 = vadd.f32 0.0, %v205
    %207 = vdwg.mxu0
    %vm208 = vcmask 261120
    %209 = vst.msk [vmem:[#allocation2] sm:$0xff] %vm208, %v203
    %210 = vst.msk [vmem:[#allocation2 + $0x8] sm:$0xff] %vm208, %v206
    %s211 = scalar_lea.vmem %s2, 16
    %v212 = vld [vmem:[%s211] sm:$0xff]
    %v213 = vld [vmem:[%s211 + $0x8] sm:$0xff]
    %v214 = vadd.f32 %v212, %v136
    %v215 = vadd.f32 %v213, %v137
    %v216 = vsel %vm148, %v214, 0.0
    %217 = vadd.xlane.f32.xlu0 %v216
    %v218 = vpop.xlane.xlu0 %217
    %v219 = vsel %vm148, %v215, 0.0
    %220 = vadd.xlane.f32.xlu0 %v219
    %v221 = vpop.xlane.xlu0 %220
    %v222 = vrsqrt.pop %v218
    %v223 = vmul.f32 %v222, %v218
    %v224 = vmul.f32 %v223, %v222
    %v225 = vmul.f32 0.5, %v224
    %v226 = vsub.f32 1.5, %v225
    %v227 = vmul.f32 %v222, %v226
    %vm228 = vweird.f32 %v218
    %vm229 = vweird.f32 %v222
    %vm230 = vmor %vm228, %vm229
    %v231 = vsel %vm230, %v222, %v227
    %v232 = vrsqrt.pop %v221
    %v233 = vmul.f32 %v232, %v221
    %v234 = vmul.f32 %v233, %v232
    %v235 = vmul.f32 0.5, %v234
    %v236 = vsub.f32 1.5, %v235
    %v237 = vmul.f32 %v232, %v236
    %vm238 = vweird.f32 %v221
    %vm239 = vweird.f32 %v232
    %vm240 = vmor %vm238, %vm239
    %v241 = vsel %vm240, %v232, %v237
    %v242 = vmul.f32 %v231, %v214
    %v243 = vmul.f32 %v241, %v215
    %v244 = vmul.f32 %v231, %v142
    %v245 = vmul.f32 %v241, %v143
    %v247 = vsel %vm148, %v242, 0
    %v250 = vsel %vm148, %v243, 0
    %252 = vmatpush.msra.mxu0 0.0
    %253 = vmatpush.msra.mxu0 0.0
    %254 = vmatpush.msra.mxu0 0.0
    %255 = vmatpush.msra.mxu0 0.0
    %256 = vmatpush.msra.mxu0 0.0
    %257 = vmatpush.msra.mxu0 0.0
    %258 = vmatpush.msra.mxu0 0.0
    %259 = vmatpush.msra.mxu0 0.0
    %260 = vmatpush.msra.mxu0 0.0
    %261 = vmatpush.msra.mxu0 0.0
    %262 = vmatpush.msra.mxu0 0.0
    %263 = vmatpush.msra.mxu0 0.0
    %264 = vmatpush.msra.mxu0 0.0
    %265 = vmatpush.msra.mxu0 0.0
    %266 = vmatpush.msra.mxu0 %v245
    %267 = vmatpush.msra.mxu0 %v244
    %268 = vmatmul.f32.gmra.mxu0 %v247
    %v269 = vpop.f32.mrf.mxu0
    %v270 = vadd.f32 0.0, %v269
    %271 = vmatmul.f32.gmra.mxu0 %v250
    %v272 = vpop.f32.mrf.mxu0
    %v273 = vadd.f32 0.0, %v272
    %274 = vdwg.mxu0
    %275 = vst.msk [vmem:[#allocation2 + $0x20] sm:$0xff] %vm208, %v270
    %276 = vst.msk [vmem:[#allocation2 + $0x28] sm:$0xff] %vm208, %v273
    %s277 = scalar_lea.vmem %s2, 32
    %v278 = vld [vmem:[%s277] sm:$0xff]
    %v279 = vld [vmem:[%s277 + $0x8] sm:$0xff]
    %v280 = vadd.f32 %v278, %v136
    %v281 = vadd.f32 %v279, %v137
    %v282 = vsel %vm148, %v280, 0.0
    %283 = vadd.xlane.f32.xlu0 %v282
    %v284 = vpop.xlane.xlu0 %283
    %v285 = vsel %vm148, %v281, 0.0
    %286 = vadd.xlane.f32.xlu0 %v285
    %v287 = vpop.xlane.xlu0 %286
    %v288 = vrsqrt.pop %v284
    %v289 = vmul.f32 %v288, %v284
    %v290 = vmul.f32 %v289, %v288
    %v291 = vmul.f32 0.5, %v290
    %v292 = vsub.f32 1.5, %v291
    %v293 = vmul.f32 %v288, %v292
    %vm294 = vweird.f32 %v284
    %vm295 = vweird.f32 %v288
    %vm296 = vmor %vm294, %vm295
    %v297 = vsel %vm296, %v288, %v293
    %v298 = vrsqrt.pop %v287
    %v299 = vmul.f32 %v298, %v287
    %v300 = vmul.f32 %v299, %v298
    %v301 = vmul.f32 0.5, %v300
    %v302 = vsub.f32 1.5, %v301
    %v303 = vmul.f32 %v298, %v302
    %vm304 = vweird.f32 %v287
    %vm305 = vweird.f32 %v298
    %vm306 = vmor %vm304, %vm305
    %v307 = vsel %vm306, %v298, %v303
    %v308 = vmul.f32 %v297, %v280
    %v309 = vmul.f32 %v307, %v281
    %v310 = vmul.f32 %v297, %v142
    %v311 = vmul.f32 %v307, %v143
    %v313 = vsel %vm148, %v308, 0
    %v316 = vsel %vm148, %v309, 0
    %318 = vmatpush.msra.mxu0 0.0
    %319 = vmatpush.msra.mxu0 0.0
    %320 = vmatpush.msra.mxu0 0.0
    %321 = vmatpush.msra.mxu0 0.0
    %322 = vmatpush.msra.mxu0 0.0
    %323 = vmatpush.msra.mxu0 0.0
    %324 = vmatpush.msra.mxu0 0.0
    %325 = vmatpush.msra.mxu0 0.0
    %326 = vmatpush.msra.mxu0 0.0
    %327 = vmatpush.msra.mxu0 0.0
    %328 = vmatpush.msra.mxu0 0.0
    %329 = vmatpush.msra.mxu0 0.0
    %330 = vmatpush.msra.mxu0 0.0
    %331 = vmatpush.msra.mxu0 0.0
    %332 = vmatpush.msra.mxu0 %v311
    %333 = vmatpush.msra.mxu0 %v310
    %334 = vmatmul.f32.gmra.mxu0 %v313
    %v335 = vpop.f32.mrf.mxu0
    %v336 = vadd.f32 0.0, %v335
    %337 = vmatmul.f32.gmra.mxu0 %v316
    %v338 = vpop.f32.mrf.mxu0
    %v339 = vadd.f32 0.0, %v338
    %340 = vdwg.mxu0
    %341 = vst.msk [vmem:[#allocation2 + $0x40] sm:$0xff] %vm208, %v336
    %342 = vst.msk [vmem:[#allocation2 + $0x48] sm:$0xff] %vm208, %v339
    %v343 = vadd.s32 %v130, 16
    %v344 = vadd.s32 %v131, 16
    %vm345 = vcmp.eq.s32.totalorder %v61, %v343
    %vm346 = vcmp.eq.s32.totalorder %v61, %v344
    %v347 = vsel %vm345, 1, 0
    %v348 = vsel %vm346, 1, 0
    %v349 = vcvt.s32.f32 %v347
    %v350 = vcvt.s32.f32 %v348
    %s351 = scalar_lea.vmem %s2, 48
    %v352 = vld [vmem:[%s351] sm:$0xff]
    %v353 = vld [vmem:[%s351 + $0x8] sm:$0xff]
    %v354 = vadd.f32 %v352, %v136
    %v355 = vadd.f32 %v353, %v137
    %v356 = vsel %vm148, %v354, 0.0
    %357 = vadd.xlane.f32.xlu0 %v356
    %v358 = vpop.xlane.xlu0 %357
    %v359 = vsel %vm148, %v355, 0.0
    %360 = vadd.xlane.f32.xlu0 %v359
    %v361 = vpop.xlane.xlu0 %360
    %v362 = vrsqrt.pop %v358
    %v363 = vmul.f32 %v362, %v358
    %v364 = vmul.f32 %v363, %v362
    %v365 = vmul.f32 0.5, %v364
    %v366 = vsub.f32 1.5, %v365
    %v367 = vmul.f32 %v362, %v366
    %vm368 = vweird.f32 %v358
    %vm369 = vweird.f32 %v362
    %vm370 = vmor %vm368, %vm369
    %v371 = vsel %vm370, %v362, %v367
    %v372 = vrsqrt.pop %v361
    %v373 = vmul.f32 %v372, %v361
    %v374 = vmul.f32 %v373, %v372
    %v375 = vmul.f32 0.5, %v374
    %v376 = vsub.f32 1.5, %v375
    %v377 = vmul.f32 %v372, %v376
    %vm378 = vweird.f32 %v361
    %vm379 = vweird.f32 %v372
    %vm380 = vmor %vm378, %vm379
    %v381 = vsel %vm380, %v372, %v377
    %v382 = vmul.f32 %v371, %v354
    %v383 = vmul.f32 %v381, %v355
    %v384 = vmul.f32 %v371, %v349
    %v385 = vmul.f32 %v381, %v350
    %v387 = vsel %vm148, %v382, 0
    %v390 = vsel %vm148, %v383, 0
    %392 = vmatpush.msra.mxu0 0.0
    %393 = vmatpush.msra.mxu0 0.0
    %394 = vmatpush.msra.mxu0 0.0
    %395 = vmatpush.msra.mxu0 0.0
    %396 = vmatpush.msra.mxu0 0.0
    %397 = vmatpush.msra.mxu0 0.0
    %398 = vmatpush.msra.mxu0 0.0
    %399 = vmatpush.msra.mxu0 0.0
    %400 = vmatpush.msra.mxu0 0.0
    %401 = vmatpush.msra.mxu0 0.0
    %402 = vmatpush.msra.mxu0 0.0
    %403 = vmatpush.msra.mxu0 0.0
    %404 = vmatpush.msra.mxu0 0.0
    %405 = vmatpush.msra.mxu0 0.0
    %406 = vmatpush.msra.mxu0 %v385
    %407 = vmatpush.msra.mxu0 %v384
    %408 = vmatmul.f32.gmra.mxu0 %v387
    %v409 = vpop.f32.mrf.mxu0
    %v410 = vadd.f32 0.0, %v409
    %411 = vmatmul.f32.gmra.mxu0 %v390
    %v412 = vpop.f32.mrf.mxu0
    %v413 = vadd.f32 0.0, %v412
    %414 = vdwg.mxu0
    %415 = vst.msk [vmem:[#allocation2 + $0x10] sm:$0xff] %vm208, %v410
    %416 = vst.msk [vmem:[#allocation2 + $0x18] sm:$0xff] %vm208, %v413
    %s417 = scalar_lea.vmem %s2, 64
    %v418 = vld [vmem:[%s417] sm:$0xff]
    %v419 = vld [vmem:[%s417 + $0x8] sm:$0xff]
    %v420 = vadd.f32 %v418, %v136
    %v421 = vadd.f32 %v419, %v137
    %v422 = vsel %vm148, %v420, 0.0
    %423 = vadd.xlane.f32.xlu0 %v422
    %v424 = vpop.xlane.xlu0 %423
    %v425 = vsel %vm148, %v421, 0.0
    %426 = vadd.xlane.f32.xlu0 %v425
    %v427 = vpop.xlane.xlu0 %426
    %v428 = vrsqrt.pop %v424
    %v429 = vmul.f32 %v428, %v424
    %v430 = vmul.f32 %v429, %v428
    %v431 = vmul.f32 0.5, %v430
    %v432 = vsub.f32 1.5, %v431
    %v433 = vmul.f32 %v428, %v432
    %vm434 = vweird.f32 %v424
    %vm435 = vweird.f32 %v428
    %vm436 = vmor %vm434, %vm435
    %v437 = vsel %vm436, %v428, %v433
    %v438 = vrsqrt.pop %v427
    %v439 = vmul.f32 %v438, %v427
    %v440 = vmul.f32 %v439, %v438
    %v441 = vmul.f32 0.5, %v440
    %v442 = vsub.f32 1.5, %v441
    %v443 = vmul.f32 %v438, %v442
    %vm444 = vweird.f32 %v427
    %vm445 = vweird.f32 %v438
    %vm446 = vmor %vm444, %vm445
    %v447 = vsel %vm446, %v438, %v443
    %v448 = vmul.f32 %v437, %v420
    %v449 = vmul.f32 %v447, %v421
    %v450 = vmul.f32 %v437, %v349
    %v451 = vmul.f32 %v447, %v350
    %v453 = vsel %vm148, %v448, 0
    %v456 = vsel %vm148, %v449, 0
    %458 = vmatpush.msra.mxu0 0.0
    %459 = vmatpush.msra.mxu0 0.0
    %460 = vmatpush.msra.mxu0 0.0
    %461 = vmatpush.msra.mxu0 0.0
    %462 = vmatpush.msra.mxu0 0.0
    %463 = vmatpush.msra.mxu0 0.0
    %464 = vmatpush.msra.mxu0 0.0
    %465 = vmatpush.msra.mxu0 0.0
    %466 = vmatpush.msra.mxu0 0.0
    %467 = vmatpush.msra.mxu0 0.0
    %468 = vmatpush.msra.mxu0 0.0
    %469 = vmatpush.msra.mxu0 0.0
    %470 = vmatpush.msra.mxu0 0.0
    %471 = vmatpush.msra.mxu0 0.0
    %472 = vmatpush.msra.mxu0 %v451
    %473 = vmatpush.msra.mxu0 %v450
    %474 = vmatmul.f32.gmra.mxu0 %v453
    %v475 = vpop.f32.mrf.mxu0
    %v476 = vadd.f32 0.0, %v475
    %477 = vmatmul.f32.gmra.mxu0 %v456
    %v478 = vpop.f32.mrf.mxu0
    %v479 = vadd.f32 0.0, %v478
    %480 = vdwg.mxu0
    %481 = vst.msk [vmem:[#allocation2 + $0x30] sm:$0xff] %vm208, %v476
    %482 = vst.msk [vmem:[#allocation2 + $0x38] sm:$0xff] %vm208, %v479
    %s483 = scalar_lea.vmem %s2, 80
    %v484 = vld [vmem:[%s483] sm:$0xff]
    %v485 = vld [vmem:[%s483 + $0x8] sm:$0xff]
    %v486 = vadd.f32 %v484, %v136
    %v487 = vadd.f32 %v485, %v137
    %v488 = vsel %vm148, %v486, 0.0
    %489 = vadd.xlane.f32.xlu0 %v488
    %v490 = vpop.xlane.xlu0 %489
    %v491 = vsel %vm148, %v487, 0.0
    %492 = vadd.xlane.f32.xlu0 %v491
    %v493 = vpop.xlane.xlu0 %492
    %v494 = vrsqrt.pop %v490
    %v495 = vmul.f32 %v494, %v490
    %v496 = vmul.f32 %v495, %v494
    %v497 = vmul.f32 0.5, %v496
    %v498 = vsub.f32 1.5, %v497
    %v499 = vmul.f32 %v494, %v498
    %vm500 = vweird.f32 %v490
    %vm501 = vweird.f32 %v494
    %vm502 = vmor %vm500, %vm501
    %v503 = vsel %vm502, %v494, %v499
    %v504 = vrsqrt.pop %v493
    %v505 = vmul.f32 %v504, %v493
    %v506 = vmul.f32 %v505, %v504
    %v507 = vmul.f32 0.5, %v506
    %v508 = vsub.f32 1.5, %v507
    %v509 = vmul.f32 %v504, %v508
    %vm510 = vweird.f32 %v493
    %vm511 = vweird.f32 %v504
    %vm512 = vmor %vm510, %vm511
    %v513 = vsel %vm512, %v504, %v509
    %v514 = vmul.f32 %v503, %v486
    %v515 = vmul.f32 %v513, %v487
    %v516 = vmul.f32 %v503, %v349
    %v517 = vmul.f32 %v513, %v350
    %v519 = vsel %vm148, %v514, 0
    %v522 = vsel %vm148, %v515, 0
    %524 = vmatpush.msra.mxu0 0.0
    %525 = vmatpush.msra.mxu0 0.0
    %526 = vmatpush.msra.mxu0 0.0
    %527 = vmatpush.msra.mxu0 0.0
    %528 = vmatpush.msra.mxu0 0.0
    %529 = vmatpush.msra.mxu0 0.0
    %530 = vmatpush.msra.mxu0 0.0
    %531 = vmatpush.msra.mxu0 0.0
    %532 = vmatpush.msra.mxu0 0.0
    %533 = vmatpush.msra.mxu0 0.0
    %534 = vmatpush.msra.mxu0 0.0
    %535 = vmatpush.msra.mxu0 0.0
    %536 = vmatpush.msra.mxu0 0.0
    %537 = vmatpush.msra.mxu0 0.0
    %538 = vmatpush.msra.mxu0 %v517
    %539 = vmatpush.msra.mxu0 %v516
    %540 = vmatmul.f32.gmra.mxu0 %v519
    %v541 = vpop.f32.mrf.mxu0
    %v542 = vadd.f32 0.0, %v541
    %543 = vmatmul.f32.gmra.mxu0 %v522
    %v544 = vpop.f32.mrf.mxu0
    %v545 = vadd.f32 0.0, %v544
    %546 = vdwg.mxu0
    %547 = vst.msk [vmem:[#allocation2 + $0x50] sm:$0xff] %vm208, %v542
    %548 = vst.msk [vmem:[#allocation2 + $0x58] sm:$0xff] %vm208, %v545
    %v549 = vld [vmem:[#allocation2] sm:$0xff]
    %v550 = vld [vmem:[#allocation2 + $0x8] sm:$0xff]
    %v551 = vld [vmem:[#allocation2 + $0x10] sm:$0xff]
    %v552 = vld [vmem:[#allocation2 + $0x18] sm:$0xff]
    %v553 = vld [vmem:[#allocation2 + $0x20] sm:$0xff]
    %v554 = vld [vmem:[#allocation2 + $0x28] sm:$0xff]
    %v555 = vld [vmem:[#allocation2 + $0x30] sm:$0xff]
    %v556 = vld [vmem:[#allocation2 + $0x38] sm:$0xff]
    %v557 = vld [vmem:[#allocation2 + $0x40] sm:$0xff]
    %v558 = vld [vmem:[#allocation2 + $0x48] sm:$0xff]
    %v559 = vld [vmem:[#allocation2 + $0x50] sm:$0xff]
    %v560 = vld [vmem:[#allocation2 + $0x58] sm:$0xff]
    %v562 = vsel %vm208, %v549, 0
    %v565 = vsel %vm208, %v550, 0
    %v568 = vsel %vm208, %v551, 0
    %v571 = vsel %vm208, %v552, 0
    %v574 = vsel %vm208, %v553, 0
    %v577 = vsel %vm208, %v554, 0
    %v580 = vsel %vm208, %v555, 0
    %v583 = vsel %vm208, %v556, 0
    %v586 = vsel %vm208, %v557, 0
    %v589 = vsel %vm208, %v558, 0
    %v592 = vsel %vm208, %v559, 0
    %v595 = vsel %vm208, %v560, 0
    %597 = vmatpush.msra.mxu0 0.0
    %598 = vmatpush.msra.mxu0 0.0
    %599 = vmatpush.msra.mxu0 0.0
    %600 = vmatpush.msra.mxu0 0.0
    %601 = vmatpush.msra.mxu0 0.0
    %602 = vmatpush.msra.mxu0 0.0
    %603 = vmatpush.msra.mxu0 0.0
    %604 = vmatpush.msra.mxu0 0.0
    %605 = vmatpush.msra.mxu0 0.0
    %606 = vmatpush.msra.mxu0 0.0
    %607 = vmatpush.msra.mxu0 0.0
    %608 = vmatpush.msra.mxu0 0.0
    %609 = vmatpush.msra.mxu0 %v127
    %610 = vmatpush.msra.mxu0 %v124
    %611 = vmatpush.msra.mxu0 %v121
    %612 = vmatpush.msra.mxu0 %v118
    %613 = vmatmul.f32.gmra.mxu0 %v562
    %v614 = vpop.f32.mrf.mxu0
    %v615 = vadd.f32 0.0, %v614
    %616 = vmatmul.f32.gmra.mxu0 %v565
    %v617 = vpop.f32.mrf.mxu0
    %v618 = vadd.f32 0.0, %v617
    %619 = vmatmul.f32.gmra.mxu0 %v568
    %v620 = vpop.f32.mrf.mxu0
    %v621 = vadd.f32 0.0, %v620
    %622 = vmatmul.f32.gmra.mxu0 %v571
    %v623 = vpop.f32.mrf.mxu0
    %v624 = vadd.f32 0.0, %v623
    %625 = vmatmul.f32.gmra.mxu0 %v574
    %v626 = vpop.f32.mrf.mxu0
    %v627 = vadd.f32 0.0, %v626
    %628 = vmatmul.f32.gmra.mxu0 %v577
    %v629 = vpop.f32.mrf.mxu0
    %v630 = vadd.f32 0.0, %v629
    %631 = vmatmul.f32.gmra.mxu0 %v580
    %v632 = vpop.f32.mrf.mxu0
    %v633 = vadd.f32 0.0, %v632
    %634 = vmatmul.f32.gmra.mxu0 %v583
    %v635 = vpop.f32.mrf.mxu0
    %v636 = vadd.f32 0.0, %v635
    %637 = vmatmul.f32.gmra.mxu0 %v586
    %v638 = vpop.f32.mrf.mxu0
    %v639 = vadd.f32 0.0, %v638
    %640 = vmatmul.f32.gmra.mxu0 %v589
    %v641 = vpop.f32.mrf.mxu0
    %v642 = vadd.f32 0.0, %v641
    %643 = vmatmul.f32.gmra.mxu0 %v592
    %v644 = vpop.f32.mrf.mxu0
    %v645 = vadd.f32 0.0, %v644
    %646 = vmatmul.f32.gmra.mxu0 %v595
    %v647 = vpop.f32.mrf.mxu0
    %v648 = vadd.f32 0.0, %v647
    %649 = vdwg.mxu0
    %v650 = vld [vmem:[#allocation7] sm:$0xff]
    %v651 = vld [vmem:[#allocation7 + $0x8] sm:$0xff]
    %v652 = vld [vmem:[#allocation7 + $0x10] sm:$0xff]
    %v653 = vld [vmem:[#allocation7 + $0x18] sm:$0xff]
    %v655 = vsel %vm208, %v615, 0
    %v658 = vsel %vm208, %v618, 0
    %v661 = vsel %vm208, %v621, 0
    %v664 = vsel %vm208, %v624, 0
    %666 = vmatpush.msra.mxu0 0.0
    %667 = vmatpush.msra.mxu0 0.0
    %668 = vmatpush.msra.mxu0 0.0
    %669 = vmatpush.msra.mxu0 0.0
    %670 = vmatpush.msra.mxu0 0.0
    %671 = vmatpush.msra.mxu0 0.0
    %672 = vmatpush.msra.mxu0 0.0
    %673 = vmatpush.msra.mxu0 0.0
    %674 = vmatpush.msra.mxu0 0.0
    %675 = vmatpush.msra.mxu0 0.0
    %676 = vmatpush.msra.mxu0 0.0
    %677 = vmatpush.msra.mxu0 0.0
    %678 = vmatpush.msra.mxu0 %v653
    %679 = vmatpush.msra.mxu0 %v652
    %680 = vmatpush.msra.mxu0 %v651
    %681 = vmatpush.msra.mxu0 %v650
    %682 = vmatmul.f32.gmra.mxu0 %v655
    %v683 = vpop.f32.mrf.mxu0
    %v684 = vadd.f32 0.0, %v683
    %685 = vmatmul.f32.gmra.mxu0 %v658
    %v686 = vpop.f32.mrf.mxu0
    %v687 = vadd.f32 0.0, %v686
    %688 = vmatmul.f32.gmra.mxu0 %v661
    %v689 = vpop.f32.mrf.mxu0
    %v690 = vadd.f32 0.0, %v689
    %691 = vmatmul.f32.gmra.mxu0 %v664
    %v692 = vpop.f32.mrf.mxu0
    %v693 = vadd.f32 0.0, %v692
    %694 = vdwg.mxu0
    %s695 = sld [smem:[#allocation3]]
    %v696 = vtanh.pop %v684
    %v697 = vtanh.pop %v687
    %v698 = vtanh.pop %v690
    %v699 = vtanh.pop %v693
    %v700 = vstv %s695
    %v701 = vmul.f32 %v700, %v696
    %v702 = vmul.f32 %v700, %v697
    %v703 = vmul.f32 %v700, %v698
    %v704 = vmul.f32 %v700, %v699
    %v705 = vadd.f32 %v701, 0.0
    %v706 = vadd.f32 %v702, 0.0
    %v707 = vadd.f32 %v703, 0.0
    %v708 = vadd.f32 %v704, 0.0
    %s709 = scalar_lea.vmem [#allocation7], 32
    %v710 = vld [vmem:[%s709] sm:$0xff]
    %v711 = vld [vmem:[%s709 + $0x8] sm:$0xff]
    %v712 = vld [vmem:[%s709 + $0x10] sm:$0xff]
    %v713 = vld [vmem:[%s709 + $0x18] sm:$0xff]
    %v715 = vsel %vm208, %v627, 0
    %v718 = vsel %vm208, %v630, 0
    %v721 = vsel %vm208, %v633, 0
    %v724 = vsel %vm208, %v636, 0
    %726 = vmatpush.msra.mxu0 0.0
    %727 = vmatpush.msra.mxu0 0.0
    %728 = vmatpush.msra.mxu0 0.0
    %729 = vmatpush.msra.mxu0 0.0
    %730 = vmatpush.msra.mxu0 0.0
    %731 = vmatpush.msra.mxu0 0.0
    %732 = vmatpush.msra.mxu0 0.0
    %733 = vmatpush.msra.mxu0 0.0
    %734 = vmatpush.msra.mxu0 0.0
    %735 = vmatpush.msra.mxu0 0.0
    %736 = vmatpush.msra.mxu0 0.0
    %737 = vmatpush.msra.mxu0 0.0
    %738 = vmatpush.msra.mxu0 %v713
    %739 = vmatpush.msra.mxu0 %v712
    %740 = vmatpush.msra.mxu0 %v711
    %741 = vmatpush.msra.mxu0 %v710
    %742 = vmatmul.f32.gmra.mxu0 %v715
    %v743 = vpop.f32.mrf.mxu0
    %v744 = vadd.f32 0.0, %v743
    %745 = vmatmul.f32.gmra.mxu0 %v718
    %v746 = vpop.f32.mrf.mxu0
    %v747 = vadd.f32 0.0, %v746
    %748 = vmatmul.f32.gmra.mxu0 %v721
    %v749 = vpop.f32.mrf.mxu0
    %v750 = vadd.f32 0.0, %v749
    %751 = vmatmul.f32.gmra.mxu0 %v724
    %v752 = vpop.f32.mrf.mxu0
    %v753 = vadd.f32 0.0, %v752
    %754 = vdwg.mxu0
    %s755 = sld [smem:[#allocation3 + $0x1]]
    %v756 = vtanh.pop %v744
    %v757 = vtanh.pop %v747
    %v758 = vtanh.pop %v750
    %v759 = vtanh.pop %v753
    %v760 = vstv %s755
    %v761 = vmul.f32 %v760, %v756
    %v762 = vmul.f32 %v760, %v757
    %v763 = vmul.f32 %v760, %v758
    %v764 = vmul.f32 %v760, %v759
    %v765 = vadd.f32 %v705, %v761
    %v766 = vadd.f32 %v706, %v762
    %v767 = vadd.f32 %v707, %v763
    %v768 = vadd.f32 %v708, %v764
    %s769 = scalar_lea.vmem [#allocation7], 64
    %v770 = vld [vmem:[%s769] sm:$0xff]
    %v771 = vld [vmem:[%s769 + $0x8] sm:$0xff]
    %v772 = vld [vmem:[%s769 + $0x10] sm:$0xff]
    %v773 = vld [vmem:[%s769 + $0x18] sm:$0xff]
    %v775 = vsel %vm208, %v639, 0
    %v778 = vsel %vm208, %v642, 0
    %v781 = vsel %vm208, %v645, 0
    %v784 = vsel %vm208, %v648, 0
    %786 = vmatpush.msra.mxu0 0.0
    %787 = vmatpush.msra.mxu0 0.0
    %788 = vmatpush.msra.mxu0 0.0
    %789 = vmatpush.msra.mxu0 0.0
    %790 = vmatpush.msra.mxu0 0.0
    %791 = vmatpush.msra.mxu0 0.0
    %792 = vmatpush.msra.mxu0 0.0
    %793 = vmatpush.msra.mxu0 0.0
    %794 = vmatpush.msra.mxu0 0.0
    %795 = vmatpush.msra.mxu0 0.0
    %796 = vmatpush.msra.mxu0 0.0
    %797 = vmatpush.msra.mxu0 0.0
    %798 = vmatpush.msra.mxu0 %v773
    %799 = vmatpush.msra.mxu0 %v772
    %800 = vmatpush.msra.mxu0 %v771
    %801 = vmatpush.msra.mxu0 %v770
    %802 = vmatmul.f32.gmra.mxu0 %v775
    %v803 = vpop.f32.mrf.mxu0
    %v804 = vadd.f32 0.0, %v803
    %805 = vmatmul.f32.gmra.mxu0 %v778
    %v806 = vpop.f32.mrf.mxu0
    %v807 = vadd.f32 0.0, %v806
    %808 = vmatmul.f32.gmra.mxu0 %v781
    %v809 = vpop.f32.mrf.mxu0
    %v810 = vadd.f32 0.0, %v809
    %811 = vmatmul.f32.gmra.mxu0 %v784
    %v812 = vpop.f32.mrf.mxu0
    %v813 = vadd.f32 0.0, %v812
    %814 = vdwg.mxu0
    %s815 = sld [smem:[#allocation3 + $0x2]]
    %v816 = vtanh.pop %v804
    %v817 = vtanh.pop %v807
    %v818 = vtanh.pop %v810
    %v819 = vtanh.pop %v813
    %v820 = vstv %s815
    %v821 = vmul.f32 %v820, %v816
    %v822 = vmul.f32 %v820, %v817
    %v823 = vmul.f32 %v820, %v818
    %v824 = vmul.f32 %v820, %v819
    %v825 = vadd.f32 %v765, %v821
    %v826 = vadd.f32 %v766, %v822
    %v827 = vadd.f32 %v767, %v823
    %v828 = vadd.f32 %v768, %v824
    %v829 = vsel %vm208, %v825, 0.0
    %830 = vadd.xlane.f32.xlu0 %v829
    %v831 = vpop.xlane.xlu0 %830
    %v832 = vsel %vm208, %v826, 0.0
    %833 = vadd.xlane.f32.xlu0 %v832
    %v834 = vpop.xlane.xlu0 %833
    %v835 = vadd.f32 %v831, 0.0
    %v836 = vadd.f32 %v834, 0.0
    %v837 = vsel %vm208, %v827, 0.0
    %838 = vadd.xlane.f32.xlu0 %v837
    %v839 = vpop.xlane.xlu0 %838
    %v840 = vsel %vm208, %v828, 0.0
    %841 = vadd.xlane.f32.xlu0 %v840
    %v842 = vpop.xlane.xlu0 %841
    %v843 = vadd.f32 %v835, %v839
    %v844 = vadd.f32 %v836, %v842
    %v845 = vmul.f32 %v843, 0.015625
    %v846 = vmul.f32 %v844, 0.015625
    %v847 = vsub.f32 %v825, %v845
    %v848 = vsub.f32 %v826, %v846
    %v849 = vsub.f32 %v827, %v845
    %v850 = vsub.f32 %v828, %v846
    %v851 = vmul.f32 %v847, %v847
    %v852 = vmul.f32 %v848, %v848
    %v853 = vsel %vm208, %v851, 0.0
    %854 = vadd.xlane.f32.xlu0 %v853
    %v855 = vpop.xlane.xlu0 %854
    %v856 = vsel %vm208, %v852, 0.0
    %857 = vadd.xlane.f32.xlu0 %v856
    %v858 = vpop.xlane.xlu0 %857
    %v859 = vadd.f32 %v855, 0.0
    %v860 = vadd.f32 %v858, 0.0
    %v861 = vmul.f32 %v849, %v849
    %v862 = vmul.f32 %v850, %v850
    %v863 = vsel %vm208, %v861, 0.0
    %864 = vadd.xlane.f32.xlu0 %v863
    %v865 = vpop.xlane.xlu0 %864
    %v866 = vsel %vm208, %v862, 0.0
    %867 = vadd.xlane.f32.xlu0 %v866
    %v868 = vpop.xlane.xlu0 %867
    %v869 = vadd.f32 %v859, %v865
    %v870 = vadd.f32 %v860, %v868
    %v871 = vmul.f32 %v869, 0.015625
    %v872 = vmul.f32 %v870, 0.015625
    %v873 = vadd.f32 %v871, 1e-05
    %v874 = vadd.f32 %v872, 1e-05
    %v875 = vrsqrt.pop %v873
    %v876 = vmul.f32 %v875, %v873
    %v877 = vmul.f32 %v876, %v875
    %v878 = vmul.f32 0.5, %v877
    %v879 = vsub.f32 1.5, %v878
    %v880 = vmul.f32 %v875, %v879
    %vm881 = vweird.f32 %v873
    %vm882 = vweird.f32 %v875
    %vm883 = vmor %vm881, %vm882
    %v884 = vsel %vm883, %v875, %v880
    %v885 = vrsqrt.pop %v874
    %v886 = vmul.f32 %v885, %v874
    %v887 = vmul.f32 %v886, %v885
    %v888 = vmul.f32 0.5, %v887
    %v889 = vsub.f32 1.5, %v888
    %v890 = vmul.f32 %v885, %v889
    %vm891 = vweird.f32 %v874
    %vm892 = vweird.f32 %v885
    %vm893 = vmor %vm891, %vm892
    %v894 = vsel %vm893, %v885, %v890
    %v895 = vld [vmem:[%s5] sm:$0xff]
    %v896 = vld [vmem:[%s5 + $0x8] sm:$0xff]
    %v897 = vmul.f32 %v884, %v895
    %v898 = vmul.f32 %v894, %v896
    %v899 = vld [vmem:[%s6] sm:$0xff]
    %v900 = vld [vmem:[%s6 + $0x8] sm:$0xff]
    %902 = vset.pattern.permute.xlu0 0
    %903 = vperm.xlu0 %902, %v897
    %v904 = vpop.permute.xlu0 %903
    %907 = vset.pattern.permute.xlu0 0
    %908 = vperm.xlu0 %907, %v898
    %v909 = vpop.permute.xlu0 %908
    %v911 = vmul.f32 %v847, %v904
    %v912 = vmul.f32 %v848, %v909
    %914 = vset.pattern.permute.xlu0 0
    %915 = vperm.xlu0 %914, %v899
    %v916 = vpop.permute.xlu0 %915
    %919 = vset.pattern.permute.xlu0 0
    %920 = vperm.xlu0 %919, %v900
    %v921 = vpop.permute.xlu0 %920
    %v923 = vadd.f32 %v911, %v916
    %v924 = vadd.f32 %v912, %v921
    %925 = vst.msk [vmem:[#allocation8] sm:$0xff] %vm208, %v923
    %926 = vst.msk [vmem:[#allocation8 + $0x8] sm:$0xff] %vm208, %v924
    %v927 = vmul.f32 %v849, %v904
    %v928 = vmul.f32 %v850, %v909
    %v929 = vadd.f32 %v927, %v916
    %v930 = vadd.f32 %v928, %v921
    %931 = vst.msk [vmem:[#allocation8 + $0x10] sm:$0xff] %vm208, %v929
    %932 = vst.msk [vmem:[#allocation8 + $0x18] sm:$0xff] %vm208, %v930
    %v933 = vld [vmem:[#allocation8] sm:$0xff]
    %v934 = vld [vmem:[#allocation8 + $0x8] sm:$0xff]
    %v935 = vld [vmem:[#allocation8 + $0x10] sm:$0xff]
    %v936 = vld [vmem:[#allocation8 + $0x18] sm:$0xff]
    %937 = vmatpush.msra.mxu0 0.0
    %938 = vmatpush.msra.mxu0 0.0
    %939 = vmatpush.msra.mxu0 0.0
    %940 = vmatpush.msra.mxu0 0.0
    %941 = vmatpush.msra.mxu0 0.0
    %942 = vmatpush.msra.mxu0 0.0
    %943 = vmatpush.msra.mxu0 0.0
    %944 = vmatpush.msra.mxu0 0.0
    %945 = vmatpush.msra.mxu0 0.0
    %946 = vmatpush.msra.mxu0 0.0
    %947 = vmatpush.msra.mxu0 0.0
    %948 = vmatpush.msra.mxu0 0.0
    %949 = vmatpush.msra.mxu0 %v936
    %950 = vmatpush.msra.mxu0 %v935
    %951 = vmatpush.msra.mxu0 %v934
    %952 = vmatpush.msra.mxu0 %v933
    %953 = vmatmul.f32.gmra.mxu0 %v562
    %v954 = vpop.f32.mrf.mxu0
    %v955 = vadd.f32 0.0, %v954
    %956 = vmatmul.f32.gmra.mxu0 %v565
    %v957 = vpop.f32.mrf.mxu0
    %v958 = vadd.f32 0.0, %v957
    %959 = vmatmul.f32.gmra.mxu0 %v568
    %v960 = vpop.f32.mrf.mxu0
    %v961 = vadd.f32 0.0, %v960
    %962 = vmatmul.f32.gmra.mxu0 %v571
    %v963 = vpop.f32.mrf.mxu0
    %v964 = vadd.f32 0.0, %v963
    %965 = vmatmul.f32.gmra.mxu0 %v574
    %v966 = vpop.f32.mrf.mxu0
    %v967 = vadd.f32 0.0, %v966
    %968 = vmatmul.f32.gmra.mxu0 %v577
    %v969 = vpop.f32.mrf.mxu0
    %v970 = vadd.f32 0.0, %v969
    %971 = vmatmul.f32.gmra.mxu0 %v580
    %v972 = vpop.f32.mrf.mxu0
    %v973 = vadd.f32 0.0, %v972
    %974 = vmatmul.f32.gmra.mxu0 %v583
    %v975 = vpop.f32.mrf.mxu0
    %v976 = vadd.f32 0.0, %v975
    %977 = vmatmul.f32.gmra.mxu0 %v586
    %v978 = vpop.f32.mrf.mxu0
    %v979 = vadd.f32 0.0, %v978
    %980 = vmatmul.f32.gmra.mxu0 %v589
    %v981 = vpop.f32.mrf.mxu0
    %v982 = vadd.f32 0.0, %v981
    %983 = vmatmul.f32.gmra.mxu0 %v592
    %v984 = vpop.f32.mrf.mxu0
    %v985 = vadd.f32 0.0, %v984
    %986 = vmatmul.f32.gmra.mxu0 %v595
    %v987 = vpop.f32.mrf.mxu0
    %v988 = vadd.f32 0.0, %v987
    %989 = vdwg.mxu0
    %s990 = scalar_lea.vmem [#allocation7], 96
    %v991 = vld [vmem:[%s990] sm:$0xff]
    %v992 = vld [vmem:[%s990 + $0x8] sm:$0xff]
    %v993 = vld [vmem:[%s990 + $0x10] sm:$0xff]
    %v994 = vld [vmem:[%s990 + $0x18] sm:$0xff]
    %v996 = vsel %vm208, %v955, 0
    %v999 = vsel %vm208, %v958, 0
    %v1002 = vsel %vm208, %v961, 0
    %v1005 = vsel %vm208, %v964, 0
    %1007 = vmatpush.msra.mxu0 0.0
    %1008 = vmatpush.msra.mxu0 0.0
    %1009 = vmatpush.msra.mxu0 0.0
    %1010 = vmatpush.msra.mxu0 0.0
    %1011 = vmatpush.msra.mxu0 0.0
    %1012 = vmatpush.msra.mxu0 0.0
    %1013 = vmatpush.msra.mxu0 0.0
    %1014 = vmatpush.msra.mxu0 0.0
    %1015 = vmatpush.msra.mxu0 0.0
    %1016 = vmatpush.msra.mxu0 0.0
    %1017 = vmatpush.msra.mxu0 0.0
    %1018 = vmatpush.msra.mxu0 0.0
    %1019 = vmatpush.msra.mxu0 %v994
    %1020 = vmatpush.msra.mxu0 %v993
    %1021 = vmatpush.msra.mxu0 %v992
    %1022 = vmatpush.msra.mxu0 %v991
    %1023 = vmatmul.f32.gmra.mxu0 %v996
    %v1024 = vpop.f32.mrf.mxu0
    %v1025 = vadd.f32 0.0, %v1024
    %1026 = vmatmul.f32.gmra.mxu0 %v999
    %v1027 = vpop.f32.mrf.mxu0
    %v1028 = vadd.f32 0.0, %v1027
    %1029 = vmatmul.f32.gmra.mxu0 %v1002
    %v1030 = vpop.f32.mrf.mxu0
    %v1031 = vadd.f32 0.0, %v1030
    %1032 = vmatmul.f32.gmra.mxu0 %v1005
    %v1033 = vpop.f32.mrf.mxu0
    %v1034 = vadd.f32 0.0, %v1033
    %1035 = vdwg.mxu0
    %s1036 = sld [smem:[#allocation3 + $0x3]]
    %v1037 = vtanh.pop %v1025
    %v1038 = vtanh.pop %v1028
    %v1039 = vtanh.pop %v1031
    %v1040 = vtanh.pop %v1034
    %v1041 = vstv %s1036
    %v1042 = vmul.f32 %v1041, %v1037
    %v1043 = vmul.f32 %v1041, %v1038
    %v1044 = vmul.f32 %v1041, %v1039
    %v1045 = vmul.f32 %v1041, %v1040
    %v1046 = vadd.f32 %v1042, 0.0
    %v1047 = vadd.f32 %v1043, 0.0
    %v1048 = vadd.f32 %v1044, 0.0
    %v1049 = vadd.f32 %v1045, 0.0
    %s1050 = scalar_lea.vmem [#allocation7], 128
    %v1051 = vld [vmem:[%s1050] sm:$0xff]
    %v1052 = vld [vmem:[%s1050 + $0x8] sm:$0xff]
    %v1053 = vld [vmem:[%s1050 + $0x10] sm:$0xff]
    %v1054 = vld [vmem:[%s1050 + $0x18] sm:$0xff]
    %v1056 = vsel %vm208, %v967, 0
    %v1059 = vsel %vm208, %v970, 0
    %v1062 = vsel %vm208, %v973, 0
    %v1065 = vsel %vm208, %v976, 0
    %1067 = vmatpush.msra.mxu0 0.0
    %1068 = vmatpush.msra.mxu0 0.0
    %1069 = vmatpush.msra.mxu0 0.0
    %1070 = vmatpush.msra.mxu0 0.0
    %1071 = vmatpush.msra.mxu0 0.0
    %1072 = vmatpush.msra.mxu0 0.0
    %1073 = vmatpush.msra.mxu0 0.0
    %1074 = vmatpush.msra.mxu0 0.0
    %1075 = vmatpush.msra.mxu0 0.0
    %1076 = vmatpush.msra.mxu0 0.0
    %1077 = vmatpush.msra.mxu0 0.0
    %1078 = vmatpush.msra.mxu0 0.0
    %1079 = vmatpush.msra.mxu0 %v1054
    %1080 = vmatpush.msra.mxu0 %v1053
    %1081 = vmatpush.msra.mxu0 %v1052
    %1082 = vmatpush.msra.mxu0 %v1051
    %1083 = vmatmul.f32.gmra.mxu0 %v1056
    %v1084 = vpop.f32.mrf.mxu0
    %v1085 = vadd.f32 0.0, %v1084
    %1086 = vmatmul.f32.gmra.mxu0 %v1059
    %v1087 = vpop.f32.mrf.mxu0
    %v1088 = vadd.f32 0.0, %v1087
    %1089 = vmatmul.f32.gmra.mxu0 %v1062
    %v1090 = vpop.f32.mrf.mxu0
    %v1091 = vadd.f32 0.0, %v1090
    %1092 = vmatmul.f32.gmra.mxu0 %v1065
    %v1093 = vpop.f32.mrf.mxu0
    %v1094 = vadd.f32 0.0, %v1093
    %1095 = vdwg.mxu0
    %s1096 = sld [smem:[#allocation3 + $0x4]]
    %v1097 = vtanh.pop %v1085
    %v1098 = vtanh.pop %v1088
    %v1099 = vtanh.pop %v1091
    %v1100 = vtanh.pop %v1094
    %v1101 = vstv %s1096
    %v1102 = vmul.f32 %v1101, %v1097
    %v1103 = vmul.f32 %v1101, %v1098
    %v1104 = vmul.f32 %v1101, %v1099
    %v1105 = vmul.f32 %v1101, %v1100
    %v1106 = vadd.f32 %v1046, %v1102
    %v1107 = vadd.f32 %v1047, %v1103
    %v1108 = vadd.f32 %v1048, %v1104
    %v1109 = vadd.f32 %v1049, %v1105
    %s1110 = scalar_lea.vmem [#allocation7], 160
    %v1111 = vld [vmem:[%s1110] sm:$0xff]
    %v1112 = vld [vmem:[%s1110 + $0x8] sm:$0xff]
    %v1113 = vld [vmem:[%s1110 + $0x10] sm:$0xff]
    %v1114 = vld [vmem:[%s1110 + $0x18] sm:$0xff]
    %v1116 = vsel %vm208, %v979, 0
    %v1119 = vsel %vm208, %v982, 0
    %v1122 = vsel %vm208, %v985, 0
    %v1125 = vsel %vm208, %v988, 0
    %1127 = vmatpush.msra.mxu0 0.0
    %1128 = vmatpush.msra.mxu0 0.0
    %1129 = vmatpush.msra.mxu0 0.0
    %1130 = vmatpush.msra.mxu0 0.0
    %1131 = vmatpush.msra.mxu0 0.0
    %1132 = vmatpush.msra.mxu0 0.0
    %1133 = vmatpush.msra.mxu0 0.0
    %1134 = vmatpush.msra.mxu0 0.0
    %1135 = vmatpush.msra.mxu0 0.0
    %1136 = vmatpush.msra.mxu0 0.0
    %1137 = vmatpush.msra.mxu0 0.0
    %1138 = vmatpush.msra.mxu0 0.0
    %1139 = vmatpush.msra.mxu0 %v1114
    %1140 = vmatpush.msra.mxu0 %v1113
    %1141 = vmatpush.msra.mxu0 %v1112
    %1142 = vmatpush.msra.mxu0 %v1111
    %1143 = vmatmul.f32.gmra.mxu0 %v1116
    %v1144 = vpop.f32.mrf.mxu0
    %v1145 = vadd.f32 0.0, %v1144
    %1146 = vmatmul.f32.gmra.mxu0 %v1119
    %v1147 = vpop.f32.mrf.mxu0
    %v1148 = vadd.f32 0.0, %v1147
    %1149 = vmatmul.f32.gmra.mxu0 %v1122
    %v1150 = vpop.f32.mrf.mxu0
    %v1151 = vadd.f32 0.0, %v1150
    %1152 = vmatmul.f32.gmra.mxu0 %v1125
    %v1153 = vpop.f32.mrf.mxu0
    %v1154 = vadd.f32 0.0, %v1153
    %1155 = vdwg.mxu0
    %s1156 = sld [smem:[#allocation3 + $0x5]]
    %v1157 = vtanh.pop %v1145
    %v1158 = vtanh.pop %v1148
    %v1159 = vtanh.pop %v1151
    %v1160 = vtanh.pop %v1154
    %v1161 = vstv %s1156
    %v1162 = vmul.f32 %v1161, %v1157
    %v1163 = vmul.f32 %v1161, %v1158
    %v1164 = vmul.f32 %v1161, %v1159
    %v1165 = vmul.f32 %v1161, %v1160
    %v1166 = vadd.f32 %v1106, %v1162
    %v1167 = vadd.f32 %v1107, %v1163
    %v1168 = vadd.f32 %v1108, %v1164
    %v1169 = vadd.f32 %v1109, %v1165
    %v1170 = vsel %vm208, %v1166, 0.0
    %1171 = vadd.xlane.f32.xlu0 %v1170
    %v1172 = vpop.xlane.xlu0 %1171
    %v1173 = vsel %vm208, %v1167, 0.0
    %1174 = vadd.xlane.f32.xlu0 %v1173
    %v1175 = vpop.xlane.xlu0 %1174
    %v1176 = vadd.f32 %v1172, 0.0
    %v1177 = vadd.f32 %v1175, 0.0
    %v1178 = vsel %vm208, %v1168, 0.0
    %1179 = vadd.xlane.f32.xlu0 %v1178
    %v1180 = vpop.xlane.xlu0 %1179
    %v1181 = vsel %vm208, %v1169, 0.0
    %1182 = vadd.xlane.f32.xlu0 %v1181
    %v1183 = vpop.xlane.xlu0 %1182
    %v1184 = vadd.f32 %v1176, %v1180
    %v1185 = vadd.f32 %v1177, %v1183
    %v1186 = vmul.f32 %v1184, 0.015625
    %v1187 = vmul.f32 %v1185, 0.015625
    %v1188 = vsub.f32 %v1166, %v1186
    %v1189 = vsub.f32 %v1167, %v1187
    %v1190 = vsub.f32 %v1168, %v1186
    %v1191 = vsub.f32 %v1169, %v1187
    %v1192 = vmul.f32 %v1188, %v1188
    %v1193 = vmul.f32 %v1189, %v1189
    %v1194 = vsel %vm208, %v1192, 0.0
    %1195 = vadd.xlane.f32.xlu0 %v1194
    %v1196 = vpop.xlane.xlu0 %1195
    %v1197 = vsel %vm208, %v1193, 0.0
    %1198 = vadd.xlane.f32.xlu0 %v1197
    %v1199 = vpop.xlane.xlu0 %1198
    %v1200 = vadd.f32 %v1196, 0.0
    %v1201 = vadd.f32 %v1199, 0.0
    %v1202 = vmul.f32 %v1190, %v1190
    %v1203 = vmul.f32 %v1191, %v1191
    %v1204 = vsel %vm208, %v1202, 0.0
    %1205 = vadd.xlane.f32.xlu0 %v1204
    %v1206 = vpop.xlane.xlu0 %1205
    %v1207 = vsel %vm208, %v1203, 0.0
    %1208 = vadd.xlane.f32.xlu0 %v1207
    %v1209 = vpop.xlane.xlu0 %1208
    %v1210 = vadd.f32 %v1200, %v1206
    %v1211 = vadd.f32 %v1201, %v1209
    %v1212 = vmul.f32 %v1210, 0.015625
    %v1213 = vmul.f32 %v1211, 0.015625
    %v1214 = vadd.f32 %v1212, 1e-05
    %v1215 = vadd.f32 %v1213, 1e-05
    %v1216 = vrsqrt.pop %v1214
    %v1217 = vmul.f32 %v1216, %v1214
    %v1218 = vmul.f32 %v1217, %v1216
    %v1219 = vmul.f32 0.5, %v1218
    %v1220 = vsub.f32 1.5, %v1219
    %v1221 = vmul.f32 %v1216, %v1220
    %vm1222 = vweird.f32 %v1214
    %vm1223 = vweird.f32 %v1216
    %vm1224 = vmor %vm1222, %vm1223
    %v1225 = vsel %vm1224, %v1216, %v1221
    %v1226 = vrsqrt.pop %v1215
    %v1227 = vmul.f32 %v1226, %v1215
    %v1228 = vmul.f32 %v1227, %v1226
    %v1229 = vmul.f32 0.5, %v1228
    %v1230 = vsub.f32 1.5, %v1229
    %v1231 = vmul.f32 %v1226, %v1230
    %vm1232 = vweird.f32 %v1215
    %vm1233 = vweird.f32 %v1226
    %vm1234 = vmor %vm1232, %vm1233
    %v1235 = vsel %vm1234, %v1226, %v1231
    %s1236 = scalar_lea.vmem %s5, 16
    %v1237 = vld [vmem:[%s1236] sm:$0xff]
    %v1238 = vld [vmem:[%s1236 + $0x8] sm:$0xff]
    %v1239 = vmul.f32 %v1225, %v1237
    %v1240 = vmul.f32 %v1235, %v1238
    %s1241 = scalar_lea.vmem %s6, 16
    %v1242 = vld [vmem:[%s1241] sm:$0xff]
    %v1243 = vld [vmem:[%s1241 + $0x8] sm:$0xff]
    %1245 = vset.pattern.permute.xlu0 0
    %1246 = vperm.xlu0 %1245, %v1239
    %v1247 = vpop.permute.xlu0 %1246
    %1250 = vset.pattern.permute.xlu0 0
    %1251 = vperm.xlu0 %1250, %v1240
    %v1252 = vpop.permute.xlu0 %1251
    %v1254 = vmul.f32 %v1188, %v1247
    %v1255 = vmul.f32 %v1189, %v1252
    %1257 = vset.pattern.permute.xlu0 0
    %1258 = vperm.xlu0 %1257, %v1242
    %v1259 = vpop.permute.xlu0 %1258
    %1262 = vset.pattern.permute.xlu0 0
    %1263 = vperm.xlu0 %1262, %v1243
    %v1264 = vpop.permute.xlu0 %1263
    %v1266 = vadd.f32 %v1254, %v1259
    %v1267 = vadd.f32 %v1255, %v1264
    %1268 = vst.msk [vmem:[#allocation8] sm:$0xff] %vm208, %v1266
    %1269 = vst.msk [vmem:[#allocation8 + $0x8] sm:$0xff] %vm208, %v1267
    %v1270 = vmul.f32 %v1190, %v1247
    %v1271 = vmul.f32 %v1191, %v1252
    %v1272 = vadd.f32 %v1270, %v1259
    %v1273 = vadd.f32 %v1271, %v1264
    %1274 = vst.msk [vmem:[#allocation8 + $0x10] sm:$0xff] %vm208, %v1272
    %1275 = vst.msk [vmem:[#allocation8 + $0x18] sm:$0xff] %vm208, %v1273
    %v1276 = vld [vmem:[#allocation8] sm:$0xff]
    %v1277 = vld [vmem:[#allocation8 + $0x8] sm:$0xff]
    %v1278 = vld [vmem:[#allocation8 + $0x10] sm:$0xff]
    %v1279 = vld [vmem:[#allocation8 + $0x18] sm:$0xff]
    %1280 = vmatpush.msra.mxu0 0.0
    %1281 = vmatpush.msra.mxu0 0.0
    %1282 = vmatpush.msra.mxu0 0.0
    %1283 = vmatpush.msra.mxu0 0.0
    %1284 = vmatpush.msra.mxu0 0.0
    %1285 = vmatpush.msra.mxu0 0.0
    %1286 = vmatpush.msra.mxu0 0.0
    %1287 = vmatpush.msra.mxu0 0.0
    %1288 = vmatpush.msra.mxu0 0.0
    %1289 = vmatpush.msra.mxu0 0.0
    %1290 = vmatpush.msra.mxu0 0.0
    %1291 = vmatpush.msra.mxu0 0.0
    %1292 = vmatpush.msra.mxu0 %v1279
    %1293 = vmatpush.msra.mxu0 %v1278
    %1294 = vmatpush.msra.mxu0 %v1277
    %1295 = vmatpush.msra.mxu0 %v1276
    %1296 = vmatmul.f32.gmra.mxu0 %v562
    %v1297 = vpop.f32.mrf.mxu0
    %v1298 = vadd.f32 0.0, %v1297
    %1299 = vmatmul.f32.gmra.mxu0 %v565
    %v1300 = vpop.f32.mrf.mxu0
    %v1301 = vadd.f32 0.0, %v1300
    %1302 = vmatmul.f32.gmra.mxu0 %v568
    %v1303 = vpop.f32.mrf.mxu0
    %v1304 = vadd.f32 0.0, %v1303
    %1305 = vmatmul.f32.gmra.mxu0 %v571
    %v1306 = vpop.f32.mrf.mxu0
    %v1307 = vadd.f32 0.0, %v1306
    %1308 = vmatmul.f32.gmra.mxu0 %v574
    %v1309 = vpop.f32.mrf.mxu0
    %v1310 = vadd.f32 0.0, %v1309
    %1311 = vmatmul.f32.gmra.mxu0 %v577
    %v1312 = vpop.f32.mrf.mxu0
    %v1313 = vadd.f32 0.0, %v1312
    %1314 = vmatmul.f32.gmra.mxu0 %v580
    %v1315 = vpop.f32.mrf.mxu0
    %v1316 = vadd.f32 0.0, %v1315
    %1317 = vmatmul.f32.gmra.mxu0 %v583
    %v1318 = vpop.f32.mrf.mxu0
    %v1319 = vadd.f32 0.0, %v1318
    %1320 = vmatmul.f32.gmra.mxu0 %v586
    %v1321 = vpop.f32.mrf.mxu0
    %v1322 = vadd.f32 0.0, %v1321
    %1323 = vmatmul.f32.gmra.mxu0 %v589
    %v1324 = vpop.f32.mrf.mxu0
    %v1325 = vadd.f32 0.0, %v1324
    %1326 = vmatmul.f32.gmra.mxu0 %v592
    %v1327 = vpop.f32.mrf.mxu0
    %v1328 = vadd.f32 0.0, %v1327
    %1329 = vmatmul.f32.gmra.mxu0 %v595
    %v1330 = vpop.f32.mrf.mxu0
    %v1331 = vadd.f32 0.0, %v1330
    %1332 = vdwg.mxu0
    %s1333 = scalar_lea.vmem [#allocation7], 192
    %v1334 = vld [vmem:[%s1333] sm:$0xff]
    %v1335 = vld [vmem:[%s1333 + $0x8] sm:$0xff]
    %v1336 = vld [vmem:[%s1333 + $0x10] sm:$0xff]
    %v1337 = vld [vmem:[%s1333 + $0x18] sm:$0xff]
    %v1339 = vsel %vm208, %v1298, 0
    %v1342 = vsel %vm208, %v1301, 0
    %v1345 = vsel %vm208, %v1304, 0
    %v1348 = vsel %vm208, %v1307, 0
    %1350 = vmatpush.msra.mxu0 0.0
    %1351 = vmatpush.msra.mxu0 0.0
    %1352 = vmatpush.msra.mxu0 0.0
    %1353 = vmatpush.msra.mxu0 0.0
    %1354 = vmatpush.msra.mxu0 0.0
    %1355 = vmatpush.msra.mxu0 0.0
    %1356 = vmatpush.msra.mxu0 0.0
    %1357 = vmatpush.msra.mxu0 0.0
    %1358 = vmatpush.msra.mxu0 0.0
    %1359 = vmatpush.msra.mxu0 0.0
    %1360 = vmatpush.msra.mxu0 0.0
    %1361 = vmatpush.msra.mxu0 0.0
    %1362 = vmatpush.msra.mxu0 %v1337
    %1363 = vmatpush.msra.mxu0 %v1336
    %1364 = vmatpush.msra.mxu0 %v1335
    %1365 = vmatpush.msra.mxu0 %v1334
    %1366 = vmatmul.f32.gmra.mxu0 %v1339
    %v1367 = vpop.f32.mrf.mxu0
    %v1368 = vadd.f32 0.0, %v1367
    %1369 = vmatmul.f32.gmra.mxu0 %v1342
    %v1370 = vpop.f32.mrf.mxu0
    %v1371 = vadd.f32 0.0, %v1370
    %1372 = vmatmul.f32.gmra.mxu0 %v1345
    %v1373 = vpop.f32.mrf.mxu0
    %v1374 = vadd.f32 0.0, %v1373
    %1375 = vmatmul.f32.gmra.mxu0 %v1348
    %v1376 = vpop.f32.mrf.mxu0
    %v1377 = vadd.f32 0.0, %v1376
    %1378 = vdwg.mxu0
    %s1379 = sld [smem:[#allocation3 + $0x6]]
    %v1380 = vtanh.pop %v1368
    %v1381 = vtanh.pop %v1371
    %v1382 = vtanh.pop %v1374
    %v1383 = vtanh.pop %v1377
    %v1384 = vstv %s1379
    %v1385 = vmul.f32 %v1384, %v1380
    %v1386 = vmul.f32 %v1384, %v1381
    %v1387 = vmul.f32 %v1384, %v1382
    %v1388 = vmul.f32 %v1384, %v1383
    %v1389 = vadd.f32 %v1385, 0.0
    %v1390 = vadd.f32 %v1386, 0.0
    %v1391 = vadd.f32 %v1387, 0.0
    %v1392 = vadd.f32 %v1388, 0.0
    %s1393 = scalar_lea.vmem [#allocation7], 224
    %v1394 = vld [vmem:[%s1393] sm:$0xff]
    %v1395 = vld [vmem:[%s1393 + $0x8] sm:$0xff]
    %v1396 = vld [vmem:[%s1393 + $0x10] sm:$0xff]
    %v1397 = vld [vmem:[%s1393 + $0x18] sm:$0xff]
    %v1399 = vsel %vm208, %v1310, 0
    %v1402 = vsel %vm208, %v1313, 0
    %v1405 = vsel %vm208, %v1316, 0
    %v1408 = vsel %vm208, %v1319, 0
    %1410 = vmatpush.msra.mxu0 0.0
    %1411 = vmatpush.msra.mxu0 0.0
    %1412 = vmatpush.msra.mxu0 0.0
    %1413 = vmatpush.msra.mxu0 0.0
    %1414 = vmatpush.msra.mxu0 0.0
    %1415 = vmatpush.msra.mxu0 0.0
    %1416 = vmatpush.msra.mxu0 0.0
    %1417 = vmatpush.msra.mxu0 0.0
    %1418 = vmatpush.msra.mxu0 0.0
    %1419 = vmatpush.msra.mxu0 0.0
    %1420 = vmatpush.msra.mxu0 0.0
    %1421 = vmatpush.msra.mxu0 0.0
    %1422 = vmatpush.msra.mxu0 %v1397
    %1423 = vmatpush.msra.mxu0 %v1396
    %1424 = vmatpush.msra.mxu0 %v1395
    %1425 = vmatpush.msra.mxu0 %v1394
    %1426 = vmatmul.f32.gmra.mxu0 %v1399
    %v1427 = vpop.f32.mrf.mxu0
    %v1428 = vadd.f32 0.0, %v1427
    %1429 = vmatmul.f32.gmra.mxu0 %v1402
    %v1430 = vpop.f32.mrf.mxu0
    %v1431 = vadd.f32 0.0, %v1430
    %1432 = vmatmul.f32.gmra.mxu0 %v1405
    %v1433 = vpop.f32.mrf.mxu0
    %v1434 = vadd.f32 0.0, %v1433
    %1435 = vmatmul.f32.gmra.mxu0 %v1408
    %v1436 = vpop.f32.mrf.mxu0
    %v1437 = vadd.f32 0.0, %v1436
    %1438 = vdwg.mxu0
    %s1439 = sld [smem:[#allocation3 + $0x7]]
    %v1440 = vtanh.pop %v1428
    %v1441 = vtanh.pop %v1431
    %v1442 = vtanh.pop %v1434
    %v1443 = vtanh.pop %v1437
    %v1444 = vstv %s1439
    %v1445 = vmul.f32 %v1444, %v1440
    %v1446 = vmul.f32 %v1444, %v1441
    %v1447 = vmul.f32 %v1444, %v1442
    %v1448 = vmul.f32 %v1444, %v1443
    %v1449 = vadd.f32 %v1389, %v1445
    %v1450 = vadd.f32 %v1390, %v1446
    %v1451 = vadd.f32 %v1391, %v1447
    %v1452 = vadd.f32 %v1392, %v1448
    %s1453 = scalar_lea.vmem [#allocation7], 256
    %v1454 = vld [vmem:[%s1453] sm:$0xff]
    %v1455 = vld [vmem:[%s1453 + $0x8] sm:$0xff]
    %v1456 = vld [vmem:[%s1453 + $0x10] sm:$0xff]
    %v1457 = vld [vmem:[%s1453 + $0x18] sm:$0xff]
    %v1459 = vsel %vm208, %v1322, 0
    %v1462 = vsel %vm208, %v1325, 0
    %v1465 = vsel %vm208, %v1328, 0
    %v1468 = vsel %vm208, %v1331, 0
    %1470 = vmatpush.msra.mxu0 0.0
    %1471 = vmatpush.msra.mxu0 0.0
    %1472 = vmatpush.msra.mxu0 0.0
    %1473 = vmatpush.msra.mxu0 0.0
    %1474 = vmatpush.msra.mxu0 0.0
    %1475 = vmatpush.msra.mxu0 0.0
    %1476 = vmatpush.msra.mxu0 0.0
    %1477 = vmatpush.msra.mxu0 0.0
    %1478 = vmatpush.msra.mxu0 0.0
    %1479 = vmatpush.msra.mxu0 0.0
    %1480 = vmatpush.msra.mxu0 0.0
    %1481 = vmatpush.msra.mxu0 0.0
    %1482 = vmatpush.msra.mxu0 %v1457
    %1483 = vmatpush.msra.mxu0 %v1456
    %1484 = vmatpush.msra.mxu0 %v1455
    %1485 = vmatpush.msra.mxu0 %v1454
    %1486 = vmatmul.f32.gmra.mxu0 %v1459
    %v1487 = vpop.f32.mrf.mxu0
    %v1488 = vadd.f32 0.0, %v1487
    %1489 = vmatmul.f32.gmra.mxu0 %v1462
    %v1490 = vpop.f32.mrf.mxu0
    %v1491 = vadd.f32 0.0, %v1490
    %1492 = vmatmul.f32.gmra.mxu0 %v1465
    %v1493 = vpop.f32.mrf.mxu0
    %v1494 = vadd.f32 0.0, %v1493
    %1495 = vmatmul.f32.gmra.mxu0 %v1468
    %v1496 = vpop.f32.mrf.mxu0
    %v1497 = vadd.f32 0.0, %v1496
    %1498 = vdwg.mxu0
    %s1499 = sld [smem:[#allocation3 + $0x8]]
    %v1500 = vtanh.pop %v1488
    %v1501 = vtanh.pop %v1491
    %v1502 = vtanh.pop %v1494
    %v1503 = vtanh.pop %v1497
    %v1504 = vstv %s1499
    %v1505 = vmul.f32 %v1504, %v1500
    %v1506 = vmul.f32 %v1504, %v1501
    %v1507 = vmul.f32 %v1504, %v1502
    %v1508 = vmul.f32 %v1504, %v1503
    %v1509 = vadd.f32 %v1449, %v1505
    %v1510 = vadd.f32 %v1450, %v1506
    %v1511 = vadd.f32 %v1451, %v1507
    %v1512 = vadd.f32 %v1452, %v1508
    %v1513 = vsel %vm208, %v1509, 0.0
    %1514 = vadd.xlane.f32.xlu0 %v1513
    %v1515 = vpop.xlane.xlu0 %1514
    %v1516 = vsel %vm208, %v1510, 0.0
    %1517 = vadd.xlane.f32.xlu0 %v1516
    %v1518 = vpop.xlane.xlu0 %1517
    %v1519 = vadd.f32 %v1515, 0.0
    %v1520 = vadd.f32 %v1518, 0.0
    %v1521 = vsel %vm208, %v1511, 0.0
    %1522 = vadd.xlane.f32.xlu0 %v1521
    %v1523 = vpop.xlane.xlu0 %1522
    %v1524 = vsel %vm208, %v1512, 0.0
    %1525 = vadd.xlane.f32.xlu0 %v1524
    %v1526 = vpop.xlane.xlu0 %1525
    %v1527 = vadd.f32 %v1519, %v1523
    %v1528 = vadd.f32 %v1520, %v1526
    %v1529 = vmul.f32 %v1527, 0.015625
    %v1530 = vmul.f32 %v1528, 0.015625
    %v1531 = vsub.f32 %v1509, %v1529
    %v1532 = vsub.f32 %v1510, %v1530
    %v1533 = vsub.f32 %v1511, %v1529
    %v1534 = vsub.f32 %v1512, %v1530
    %v1535 = vmul.f32 %v1531, %v1531
    %v1536 = vmul.f32 %v1532, %v1532
    %v1537 = vsel %vm208, %v1535, 0.0
    %1538 = vadd.xlane.f32.xlu0 %v1537
    %v1539 = vpop.xlane.xlu0 %1538
    %v1540 = vsel %vm208, %v1536, 0.0
    %1541 = vadd.xlane.f32.xlu0 %v1540
    %v1542 = vpop.xlane.xlu0 %1541
    %v1543 = vadd.f32 %v1539, 0.0
    %v1544 = vadd.f32 %v1542, 0.0
    %v1545 = vmul.f32 %v1533, %v1533
    %v1546 = vmul.f32 %v1534, %v1534
    %v1547 = vsel %vm208, %v1545, 0.0
    %1548 = vadd.xlane.f32.xlu0 %v1547
    %v1549 = vpop.xlane.xlu0 %1548
    %v1550 = vsel %vm208, %v1546, 0.0
    %1551 = vadd.xlane.f32.xlu0 %v1550
    %v1552 = vpop.xlane.xlu0 %1551
    %v1553 = vadd.f32 %v1543, %v1549
    %v1554 = vadd.f32 %v1544, %v1552
    %v1555 = vmul.f32 %v1553, 0.015625
    %v1556 = vmul.f32 %v1554, 0.015625
    %v1557 = vadd.f32 %v1555, 1e-05
    %v1558 = vadd.f32 %v1556, 1e-05
    %v1559 = vrsqrt.pop %v1557
    %v1560 = vmul.f32 %v1559, %v1557
    %v1561 = vmul.f32 %v1560, %v1559
    %v1562 = vmul.f32 0.5, %v1561
    %v1563 = vsub.f32 1.5, %v1562
    %v1564 = vmul.f32 %v1559, %v1563
    %vm1565 = vweird.f32 %v1557
    %vm1566 = vweird.f32 %v1559
    %vm1567 = vmor %vm1565, %vm1566
    %v1568 = vsel %vm1567, %v1559, %v1564
    %v1569 = vrsqrt.pop %v1558
    %v1570 = vmul.f32 %v1569, %v1558
    %v1571 = vmul.f32 %v1570, %v1569
    %v1572 = vmul.f32 0.5, %v1571
    %v1573 = vsub.f32 1.5, %v1572
    %v1574 = vmul.f32 %v1569, %v1573
    %vm1575 = vweird.f32 %v1558
    %vm1576 = vweird.f32 %v1569
    %vm1577 = vmor %vm1575, %vm1576
    %v1578 = vsel %vm1577, %v1569, %v1574
    %s1579 = scalar_lea.vmem %s5, 32
    %v1580 = vld [vmem:[%s1579] sm:$0xff]
    %v1581 = vld [vmem:[%s1579 + $0x8] sm:$0xff]
    %v1582 = vmul.f32 %v1568, %v1580
    %v1583 = vmul.f32 %v1578, %v1581
    %s1584 = scalar_lea.vmem %s6, 32
    %v1585 = vld [vmem:[%s1584] sm:$0xff]
    %v1586 = vld [vmem:[%s1584 + $0x8] sm:$0xff]
    %1588 = vset.pattern.permute.xlu0 0
    %1589 = vperm.xlu0 %1588, %v1582
    %v1590 = vpop.permute.xlu0 %1589
    %1593 = vset.pattern.permute.xlu0 0
    %1594 = vperm.xlu0 %1593, %v1583
    %v1595 = vpop.permute.xlu0 %1594
    %v1597 = vmul.f32 %v1531, %v1590
    %v1598 = vmul.f32 %v1532, %v1595
    %1600 = vset.pattern.permute.xlu0 0
    %1601 = vperm.xlu0 %1600, %v1585
    %v1602 = vpop.permute.xlu0 %1601
    %1605 = vset.pattern.permute.xlu0 0
    %1606 = vperm.xlu0 %1605, %v1586
    %v1607 = vpop.permute.xlu0 %1606
    %v1609 = vadd.f32 %v1597, %v1602
    %v1610 = vadd.f32 %v1598, %v1607
    %1611 = vst.msk [vmem:[#allocation8] sm:$0xff] %vm208, %v1609
    %1612 = vst.msk [vmem:[#allocation8 + $0x8] sm:$0xff] %vm208, %v1610
    %v1613 = vmul.f32 %v1533, %v1590
    %v1614 = vmul.f32 %v1534, %v1595
    %v1615 = vadd.f32 %v1613, %v1602
    %v1616 = vadd.f32 %v1614, %v1607
    %1617 = vst.msk [vmem:[#allocation8 + $0x10] sm:$0xff] %vm208, %v1615
    %1618 = vst.msk [vmem:[#allocation8 + $0x18] sm:$0xff] %vm208, %v1616
    // Predicated region
    $region38: #{gcn2_forward.1} parent=1 // pred_check
      _
    $region39: #{gcn2_forward.1} parent=1 // pred_check_branch
      %1620 = sbr.rel (0) target = $region41
    $region40: #{gcn2_forward.1} parent=1 // pred_region
      %1622 = vsyncadd [#allocation5], 0
      %s1623 = sshll.u32 [#allocation8], 4
      %s1624 = int_to_ptr.vmem [resolvable:$true] %s1623
      %s1625 = sshll.u32 %s7, 4
      %s1626 = int_to_ptr.hbm [resolvable:$true] %s1625
      %1631 = dma.vmem_to_hbm [thread:$0]  %s1624, 512, %s1626, [#allocation5], 128, 128, 8
    $region41: #{gcn2_forward.1} parent=1 // pred_fallthru
      _
    // Predicated region
    $region42: #{gcn2_forward.1} parent=1 // pred_check
      _
    $region43: #{gcn2_forward.1} parent=1 // pred_check_branch
      %1633 = sbr.rel (0) target = $region45
    $region44: #{gcn2_forward.1} parent=1 // pred_region
      %1635 = dma.done [#allocation5], 512
    $region45: #{gcn2_forward.1} parent=1 // pred_fallthru
      _
    %1636 = vsyncpa [#allocation4], 1
    %1637 = vsyncpa [#allocation5], 1
    %1638 = vsyncpa [#allocation6], 1

</llo_original>
